<compile_context>
chip_gen: v6e
topology: v6e:2x2x1
jax: 0.10.0
libtpu: 0.0.40
codegen_flags: <defaults>
</compile_context>

<pallas_src>
import jax
import jax.numpy as jnp
from jax import lax
from jax.experimental import pallas as pl
from jax.experimental.pallas import tpu as pltpu

IN_FEATURES = 384
OUT_FEATURES = 1536


def _pick_n_tile():
    """768-wide tiles (2 steps) on v5e/v6e; 384-wide (4 steps) on v7x so each
    of its two TensorCores runs >=2 pipelined steps instead of 1 exposed one."""
    try:
        kind = jax.devices()[0].device_kind.lower()
    except Exception:
        kind = ""
    if "v7" in kind or "7x" in kind:
        return 384
    return 768


def _linear_gelu_kernel(x_ref, w_ref, b_ref, o_ref):
    # x_ref: (M, K) fp32, w_ref: (K, Nt) fp32, b_ref: (1, Nt) fp32
    y = jnp.dot(x_ref[...], w_ref[...], preferred_element_type=jnp.float32)
    y = y + b_ref[...]
    # GELU(approximate='none'): 0.5 * y * (1 + erf(y / sqrt(2)))
    inv_sqrt2 = jnp.float32(0.7071067811865476)
    o_ref[...] = 0.5 * y * (1.0 + lax.erf(y * inv_sqrt2))


def linear_gelu(x, w, b):
    """x: (..., K) fp32, w: (K, N) fp32, b: (N,) fp32 -> (..., N) fp32."""
    lead_shape = x.shape[:-1]
    K = x.shape[-1]
    N = w.shape[-1]
    M = 1
    for d in lead_shape:
        M *= d
    x2d = x.reshape(M, K)
    b2d = b.reshape(1, N)

    n_tile = _pick_n_tile()
    n_tiles = pl.cdiv(N, n_tile)

    cost = pl.CostEstimate(
        flops=2 * M * K * N,
        transcendentals=M * N,
        bytes_accessed=4 * (M * K + K * N + N + M * N),
    )

    out2d = pl.pallas_call(
        _linear_gelu_kernel,
        out_shape=jax.ShapeDtypeStruct((M, N), jnp.float32),
        grid_spec=pltpu.PrefetchScalarGridSpec(
            num_scalar_prefetch=0,
            grid=(n_tiles,),
            in_specs=[
                # Full activations; block == full array dims so M=196 (not a
                # multiple of 8) is legal. Constant index_map -> fetched once.
                pl.BlockSpec((M, K), lambda j: (0, 0)),
                pl.BlockSpec((K, n_tile), lambda j: (0, j)),   # weight column tile
                pl.BlockSpec((1, n_tile), lambda j: (0, j)),   # bias tile
            ],
            out_specs=pl.BlockSpec((M, n_tile), lambda j: (0, j)),
        ),
        compiler_params=pltpu.CompilerParams(
            dimension_semantics=("parallel",)
        ),
        cost_estimate=cost,
    )(x2d, w, b2d)

    return out2d.reshape(*lead_shape, N)


def _reference(x, w, b):
    y = jnp.einsum("...k,kn->...n", x, w) + b
    return 0.5 * y * (1.0 + lax.erf(y * jnp.float32(0.7071067811865476)))


if __name__ == "__main__":
    key = jax.random.PRNGKey(0)
    kx, kw, kb = jax.random.split(key, 3)

    # Input consistent with the module's forward: (1, 14, 14, 384)
    x = jax.random.normal(kx, (1, 14, 14, IN_FEATURES), dtype=jnp.float32)

    # Deterministic Linear init (PyTorch-style uniform(-1/sqrt(K), 1/sqrt(K)))
    bound = 1.0 / (IN_FEATURES ** 0.5)
    # Note: PyTorch stores weight as (out, in); we keep (in, out) for the matmul.
    w = jax.random.uniform(kw, (IN_FEATURES, OUT_FEATURES), dtype=jnp.float32,
                           minval=-bound, maxval=bound)
    b = jax.random.uniform(kb, (OUT_FEATURES,), dtype=jnp.float32,
                           minval=-bound, maxval=bound)

    out = linear_gelu(x, w, b)
    out = jax.block_until_ready(out)

    ref = _reference(x, w, b)
    assert out.shape == (1, 14, 14, OUT_FEATURES), out.shape
    assert jnp.allclose(out, ref, atol=1e-4, rtol=1e-4), "mismatch vs reference"

    print("KERNEL_OK")
</pallas_src>

<mosaic_0001>
module attributes {stable_mosaic.version = 11 : i64} {
  func.func @_linear_gelu_kernel(%arg0: i32, %arg1: memref<196x384xf32, #tpu.memory_space<vmem>>, %arg2: memref<384x768xf32, #tpu.memory_space<vmem>>, %arg3: memref<1x768xf32, #tpu.memory_space<vmem>>, %arg4: memref<196x768xf32, #tpu.memory_space<vmem>>) attributes {dimension_semantics = [#tpu.dimension_semantics<parallel>], iteration_bounds = array<i64: 2>, scalar_prefetch = 0 : i64, scratch_operands = 0 : i64, tpu.core_type = #tpu.core_type<tc>, window_params = [{pipeline_mode = #tpu.pipeline_mode<synchronous>, transform_indices = @transform_0, window_bounds = array<i64: 196, 384>}, {transform_indices = @transform_1, window_bounds = array<i64: 384, 768>}, {transform_indices = @transform_2, window_bounds = array<i64: 1, 768>}, {transform_indices = @transform_3, window_bounds = array<i64: 196, 768>}]} {
    %c0 = arith.constant 0 : index
    %c0_0 = arith.constant 0 : index
    %0 = vector.load %arg1[%c0, %c0_0] : memref<196x384xf32, #tpu.memory_space<vmem>>, vector<196x384xf32>
    %c0_1 = arith.constant 0 : index
    %c0_2 = arith.constant 0 : index
    %1 = vector.load %arg2[%c0_1, %c0_2] : memref<384x768xf32, #tpu.memory_space<vmem>>, vector<384x768xf32>
    %cst = arith.constant dense<0.000000e+00> : vector<196x768xf32>
    %2 = tpu.matmul %0, %1, %cst {dimension_numbers = #tpu.dot_dimension_numbers<[1], [0], [0], [1], [0, 0, 1, 1], [], []>} : vector<196x384xf32>, vector<384x768xf32>, vector<196x768xf32> -> vector<196x768xf32>
    %c0_3 = arith.constant 0 : index
    %c0_4 = arith.constant 0 : index
    %3 = vector.load %arg3[%c0_3, %c0_4] : memref<1x768xf32, #tpu.memory_space<vmem>>, vector<1x768xf32>
    %4 = vector.broadcast %3 : vector<1x768xf32> to vector<196x768xf32>
    %5 = arith.addf %2, %4 : vector<196x768xf32>
    %cst_5 = arith.constant 5.000000e-01 : f32
    %6 = vector.broadcast %cst_5 : f32 to vector<196x768xf32>
    %7 = arith.mulf %6, %5 : vector<196x768xf32>
    %cst_6 = arith.constant 0.707106769 : f32
    %8 = vector.broadcast %cst_6 : f32 to vector<196x768xf32>
    %9 = arith.mulf %5, %8 : vector<196x768xf32>
    %10 = math.erf %9 : vector<196x768xf32>
    %cst_7 = arith.constant 1.000000e+00 : f32
    %11 = vector.broadcast %cst_7 : f32 to vector<196x768xf32>
    %12 = arith.addf %11, %10 : vector<196x768xf32>
    %13 = arith.mulf %7, %12 : vector<196x768xf32>
    %c0_8 = arith.constant 0 : index
    %c0_9 = arith.constant 0 : index
    %14 = vector.load %arg4[%c0_8, %c0_9] : memref<196x768xf32, #tpu.memory_space<vmem>>, vector<196x768xf32>
    tpu.vector_store %arg4[%c0_8, %c0_9], %13 {strides = array<i32>} : memref<196x768xf32, #tpu.memory_space<vmem>>, vector<196x768xf32>,
    return
  }
  func.func @transform_0(%arg0: i32) -> (i32, i32) {
    %c0_i32 = arith.constant 0 : i32
    %c0_i32_0 = arith.constant 0 : i32
    %c0_i32_1 = arith.constant 0 : i32
    return %c0_i32, %c0_i32_0 : i32, i32
  }
  func.func @transform_1(%arg0: i32) -> (i32, i32) {
    %c0_i32 = arith.constant 0 : i32
    %c0_i32_0 = arith.constant 0 : i32
    return %c0_i32, %arg0 : i32, i32
  }
  func.func @transform_2(%arg0: i32) -> (i32, i32) {
    %c0_i32 = arith.constant 0 : i32
    %c0_i32_0 = arith.constant 0 : i32
    return %c0_i32, %arg0 : i32, i32
  }
  func.func @transform_3(%arg0: i32) -> (i32, i32) {
    %c0_i32 = arith.constant 0 : i32
    %c0_i32_0 = arith.constant 0 : i32
    return %c0_i32, %arg0 : i32, i32
  }
}

</mosaic_0001>

<llo_original>
// kernel: tpu_custom_call.1
$region0: #{tpu_custom_call.1}
  #allocation0 [shape = 'u32[]', space=smem, size = 0x4, offset = 0x4, fixed_abs, tag = 'smem constant byte address 0x4 - core index']
  #allocation1 [shape = 'u32[144,128]{1,0:T(1,128)}', space=vmem, size = 0x12000, scoped, tag = 'internal scratch']
  %s0 = inlined_call_operand.hbm [shape: f32[196,384], index: 0, kind: input, shape index: {}]
  %s1 = inlined_call_operand.hbm [shape: f32[384,1536], index: 1, kind: input, shape index: {}]
  %s2 = inlined_call_operand.hbm [shape: f32[1,1536], index: 2, kind: input, shape index: {}]
  %s3 = inlined_call_operand.hbm [shape: f32[196,1536], index: 3, kind: output, shape index: {}]
  %s4 = sld [smem:[#allocation0]]
  $region57: #{tpu_custom_call.1} parent=0
    _
  %s6 = ssub.s32 1, %s4
  %s7 = scalar_select 0, %s6, %s4
  $region1: #{tpu_custom_call.1} parent=0
    #allocation2 [shape = 'u8[307200]{0}', space=vmem, size = 0x4b000, scoped, tag = 'input window, operand 0, single buffered']
    #allocation3 [shape = 's32[2]{0}', space=sflag, size = 0x8, scoped, tag = 'scoped memory for tpu_custom_call.1']
    #allocation4 [shape = 's32[2]{0}', space=sflag, size = 0x8, scoped, tag = 'scoped memory for tpu_custom_call.1']
    #allocation5 [shape = 'u8[2359296]{0}', space=vmem, size = 0x240000, scoped, tag = 'input window, operand 1']
    #allocation6 [shape = 's32[2]{0}', space=sflag, size = 0x8, scoped, tag = 'scoped memory for tpu_custom_call.1']
    #allocation7 [shape = 'u8[6144]{0}', space=vmem, size = 0x1800, scoped, tag = 'input window, operand 2']
    #allocation8 [shape = 'u8[1228800]{0}', space=vmem, size = 0x12c000, scoped, tag = 'output window, operand 0']
    %8 = vsyncpa [#allocation3], 0
    %9 = vsyncpa [#allocation6], 0
    %s10 = scalar_lea.sflag [#allocation6], 1
    %11 = vsyncpa %s10, 0
    %12 = vsyncpa [#allocation4], 0
    %s13 = scalar_lea.sflag [#allocation4], 1
    %14 = vsyncpa %s13, 0
    loop: start=0, step=1, limit=4
    $region2: #{tpu_custom_call.1} parent=1 // loop_pre_header
      _
    $region3: #{tpu_custom_call.1} parent=1 // loop_header
      %s16 = sphi 0, %s20
      %p17 = scmp.ge.s32.totalorder %s16, 4
      %s24 = sphi 0, %s24
      %s26 = sphi 0, %s24
      %s27 = sphi 0, %s26
      %s41 = sphi 0, %s27
      %s47 = sphi 0, %s49
      %s50 = sphi 0, %s47
      %s51 = sphi 0, %s50
      %s67 = sphi 0, %s51
      %s73 = sphi 0, %s75
      %s76 = sphi 0, %s73
      %s77 = sphi 0, %s76
      %s93 = sphi 0, %s77
      %s99 = sphi 0, %s101
      %s102 = sphi 0, %s99
      %s103 = sphi 0, %s102
      %s119 = sphi 0, %s103
    $region4: #{tpu_custom_call.1} parent=1 // loop_header_branch
      %19 = sbr.rel (%p17) target = $region8
    $region5: #{tpu_custom_call.1} parent=1 // loop_body
      %s21 = ssub.s32 %s16, 1
      %s22 = ssub.s32 %s16, 2
      %s23 = sadd.s32 %s16, 1
      %s25 = sadd.s32 %s24, 1
      %p28 = scmp.eq.s32.totalorder %s16, 1
      %p29 = scmp.ne.s32.totalorder %s24, %s26
      %p30 = scmp.eq.s32.totalorder %s16, 0
      %p31 = por %p29, %p30
      %p32 = scmp.ne.s32.totalorder %s24, %s26
      %p33 = scmp.eq.s32.totalorder %s21, 1
      %p34 = por %p32, %p33
      %p35 = scmp.ne.s32.totalorder %s26, %s27
      %p36 = scmp.eq.s32.totalorder %s21, 0
      %p37 = por %p35, %p36
      %p38 = scmp.ne.s32.totalorder %s26, %s27
      %p39 = scmp.eq.s32.totalorder %s22, 1
      %p40 = por %p38, %p39
      %p42 = scmp.ne.s32.totalorder %s27, %s41
      %p43 = scmp.eq.s32.totalorder %s22, 0
      %p44 = por %p42, %p43
      %s45 = ssub.s32 %s16, %s23
      %p46 = scmp.eq.s32.totalorder %s45, 0
      %s48 = sadd.s32 %s47, 1
      %s49 = scalar_select %p46, %s47, %s48
      %p52 = pneg %p46
      %p53 = scmp.eq.s32.totalorder %s16, 1
      %p54 = por %p52, %p53
      %p55 = scmp.ne.s32.totalorder %s47, %s50
      %p56 = scmp.eq.s32.totalorder %s16, 0
      %p57 = por %p55, %p56
      %p58 = scmp.ne.s32.totalorder %s47, %s50
      %p59 = scmp.eq.s32.totalorder %s21, 1
      %p60 = por %p58, %p59
      %p61 = scmp.ne.s32.totalorder %s50, %s51
      %p62 = scmp.eq.s32.totalorder %s21, 0
      %p63 = por %p61, %p62
      %p64 = scmp.ne.s32.totalorder %s50, %s51
      %p65 = scmp.eq.s32.totalorder %s22, 1
      %p66 = por %p64, %p65
      %p68 = scmp.ne.s32.totalorder %s51, %s67
      %p69 = scmp.eq.s32.totalorder %s22, 0
      %p70 = por %p68, %p69
      %s71 = ssub.s32 %s16, %s23
      %p72 = scmp.eq.s32.totalorder %s71, 0
      %s74 = sadd.s32 %s73, 1
      %s75 = scalar_select %p72, %s73, %s74
      %p78 = pneg %p72
      %p79 = scmp.eq.s32.totalorder %s16, 1
      %p80 = por %p78, %p79
      %p81 = scmp.ne.s32.totalorder %s73, %s76
      %p82 = scmp.eq.s32.totalorder %s16, 0
      %p83 = por %p81, %p82
      %p84 = scmp.ne.s32.totalorder %s73, %s76
      %p85 = scmp.eq.s32.totalorder %s21, 1
      %p86 = por %p84, %p85
      %p87 = scmp.ne.s32.totalorder %s76, %s77
      %p88 = scmp.eq.s32.totalorder %s21, 0
      %p89 = por %p87, %p88
      %p90 = scmp.ne.s32.totalorder %s76, %s77
      %p91 = scmp.eq.s32.totalorder %s22, 1
      %p92 = por %p90, %p91
      %p94 = scmp.ne.s32.totalorder %s77, %s93
      %p95 = scmp.eq.s32.totalorder %s22, 0
      %p96 = por %p94, %p95
      %s97 = ssub.s32 %s16, %s23
      %p98 = scmp.eq.s32.totalorder %s97, 0
      %s100 = sadd.s32 %s99, 1
      %s101 = scalar_select %p98, %s99, %s100
      %p104 = pneg %p98
      %p105 = scmp.eq.s32.totalorder %s16, 1
      %p106 = por %p104, %p105
      %p107 = scmp.ne.s32.totalorder %s99, %s102
      %p108 = scmp.eq.s32.totalorder %s16, 0
      %p109 = por %p107, %p108
      %p110 = scmp.ne.s32.totalorder %s99, %s102
      %p111 = scmp.eq.s32.totalorder %s21, 1
      %p112 = por %p110, %p111
      %p113 = scmp.ne.s32.totalorder %s102, %s103
      %p114 = scmp.eq.s32.totalorder %s21, 0
      %p115 = por %p113, %p114
      %p116 = scmp.ne.s32.totalorder %s102, %s103
      %p117 = scmp.eq.s32.totalorder %s22, 1
      %p118 = por %p116, %p117
      %p120 = scmp.ne.s32.totalorder %s103, %s119
      %p121 = scmp.eq.s32.totalorder %s22, 0
      %p122 = por %p120, %p121
      %p123 = scmp.le.s32.totalorder 1, %s16
      %p124 = scmp.lt.s32.totalorder %s16, 3
      %p125 = pnand %p123, %p124
      %p126 = pneg %p125
      // Predicated region
      $region9: #{tpu_custom_call.1} parent=5 // pred_check
        _
      $region10: #{tpu_custom_call.1} parent=5 // pred_check_branch
        %128 = sbr.rel (%p125) target = $region12
      $region11: #{tpu_custom_call.1} parent=5 // pred_region
        %s129 = ssub.s32 %s16, 1
        // Predicated region
        $region13: #{tpu_custom_call.1} parent=11 // pred_check
          %p130 = pneg %p37
        $region14: #{tpu_custom_call.1} parent=11 // pred_check_branch
          %132 = sbr.rel (%p130) target = $region16
        $region15: #{tpu_custom_call.1} parent=11 // pred_region
          %s134 = ssub.s32 9600, 9600
          %135 = vsyncadd [#allocation3], %s134
          %s136 = sshll.u32 [#allocation2], 4
          %s137 = int_to_ptr.vmem [resolvable:$true] %s136
          %142 = dma.hbm_to_vmem [thread:$0]  %s0, 9600, %s137, [#allocation3], 384, 384, 24
        $region16: #{tpu_custom_call.1} parent=11 // pred_fallthru
          _
      $region12: #{tpu_custom_call.1} parent=5 // pred_fallthru
        _
      %p143 = scmp.lt.s32.totalorder %s16, 2
      // Predicated region
      $region17: #{tpu_custom_call.1} parent=5 // pred_check
        %p144 = pneg %p143
      $region18: #{tpu_custom_call.1} parent=5 // pred_check_branch
        %146 = sbr.rel (%p144) target = $region20
      $region19: #{tpu_custom_call.1} parent=5 // pred_region
        // Predicated region
        $region21: #{tpu_custom_call.1} parent=19 // pred_check
          %p147 = pneg %p57
        $region22: #{tpu_custom_call.1} parent=19 // pred_check_branch
          %149 = sbr.rel (%p147) target = $region24
        $region23: #{tpu_custom_call.1} parent=19 // pred_region
          %s150 = sand.u32 %s16, 1
          %s151 = scalar_lea.sflag [#allocation6], %s150
          %s152 = sand.u32 %s47, 1
          %s153 = smul.addr %s152, 2304
          %s154 = scalar_lea.vmem [#allocation5], %s153
          %s155 = smul.u32 6, %s16
          %s157 = ssub.s32 36864, 36864
          %158 = vsyncadd %s151, %s157
          %s159 = smul.addr %s155, 128
          %s160 = scalar_lea.hbm %s1, %s159
          %s161 = sshll.u32 %s154, 4
          %s162 = int_to_ptr.vmem [resolvable:$true] %s161
          %167 = dma.hbm_to_vmem [thread:$0]  %s160, 36864, %s162, %s151, 1536, 768, 48
        $region24: #{tpu_custom_call.1} parent=19 // pred_fallthru
          _
        // Predicated region
        $region25: #{tpu_custom_call.1} parent=19 // pred_check
          %p168 = pneg %p83
        $region26: #{tpu_custom_call.1} parent=19 // pred_check_branch
          %170 = sbr.rel (%p168) target = $region28
        $region27: #{tpu_custom_call.1} parent=19 // pred_region
          %s171 = sand.u32 %s16, 1
          %s172 = scalar_lea.sflag [#allocation6], %s171
          %s173 = sand.u32 %s73, 1
          %s174 = smul.addr %s173, 6
          %s175 = scalar_lea.vmem [#allocation7], %s174
          %s176 = smul.u32 6, %s16
          %s178 = ssub.s32 96, 96
          %179 = vsyncadd %s172, %s178
          %s180 = smul.addr %s176, 16
          %s181 = scalar_lea.hbm %s2, %s180
          %s183 = sshll.u32 %s175, 4
          %s184 = int_to_ptr.vmem [resolvable:$true] %s183
          %186 = dma.hbm_to_vmem [thread:$0]  %s181, 96, %s184, %s172
        $region28: #{tpu_custom_call.1} parent=19 // pred_fallthru
          _
      $region20: #{tpu_custom_call.1} parent=5 // pred_fallthru
        _
      %p187 = scmp.le.s32.totalorder 1, %s16
      %p188 = scmp.lt.s32.totalorder %s16, 3
      %p189 = pnand %p187, %p188
      %p190 = pneg %p189
      // Predicated region
      $region29: #{tpu_custom_call.1} parent=5 // pred_check
        _
      $region30: #{tpu_custom_call.1} parent=5 // pred_check_branch
        %192 = sbr.rel (%p189) target = $region32
      $region31: #{tpu_custom_call.1} parent=5 // pred_region
        %s193 = ssub.s32 %s16, 1
        // Predicated region
        $region33: #{tpu_custom_call.1} parent=31 // pred_check
          %p194 = pneg %p37
        $region34: #{tpu_custom_call.1} parent=31 // pred_check_branch
          %196 = sbr.rel (%p194) target = $region36
        $region35: #{tpu_custom_call.1} parent=31 // pred_region
          %197 = dma.done [#allocation3], 9600
        $region36: #{tpu_custom_call.1} parent=31 // pred_fallthru
          _
        %s198 = sand.u32 %s21, 1
        %s199 = scalar_lea.sflag [#allocation6], %s198
        %s200 = sand.u32 %s50, 1
        %s201 = smul.addr %s200, 2304
        %s202 = scalar_lea.vmem [#allocation5], %s201
        // Predicated region
        $region37: #{tpu_custom_call.1} parent=31 // pred_check
          %p203 = pneg %p63
        $region38: #{tpu_custom_call.1} parent=31 // pred_check_branch
          %205 = sbr.rel (%p203) target = $region40
        $region39: #{tpu_custom_call.1} parent=31 // pred_region
          %206 = dma.done %s199, 36864
        $region40: #{tpu_custom_call.1} parent=31 // pred_fallthru
          _
        %s207 = sand.u32 %s21, 1
        %s208 = scalar_lea.sflag [#allocation6], %s207
        %s209 = sand.u32 %s76, 1
        %s210 = smul.addr %s209, 6
        %s211 = scalar_lea.vmem [#allocation7], %s210
        // Predicated region
        $region41: #{tpu_custom_call.1} parent=31 // pred_check
          %p212 = pneg %p89
        $region42: #{tpu_custom_call.1} parent=31 // pred_check_branch
          %214 = sbr.rel (%p212) target = $region44
        $region43: #{tpu_custom_call.1} parent=31 // pred_region
          %215 = dma.done %s208, 96
        $region44: #{tpu_custom_call.1} parent=31 // pred_fallthru
          _
        %p216 = pneg %p37
        %p217 = pneg %p34
        %s218 = sand.u32 %s21, 1
        %s219 = scalar_lea.sflag [#allocation6], %s218
        %s220 = sand.u32 %s50, 1
        %s221 = smul.addr %s220, 2304
        %s222 = scalar_lea.vmem [#allocation5], %s221
        %p223 = pneg %p63
        %p224 = pneg %p60
        %s225 = sand.u32 %s21, 1
        %s226 = scalar_lea.sflag [#allocation6], %s225
        %s227 = sand.u32 %s76, 1
        %s228 = smul.addr %s227, 6
        %s229 = scalar_lea.vmem [#allocation7], %s228
        %p230 = pneg %p89
        %p231 = pneg %p86
        %p232 = pneg %p115
        %p233 = pneg %p112
        %s234 = sand.u32 %s102, 1
        %s235 = scalar_lea.sflag [#allocation4], %s234
        %s236 = sand.u32 %s102, 1
        %s237 = smul.addr %s236, 1200
        %s238 = scalar_lea.vmem [#allocation8], %s237
        %s239 = smul.u32 6, %s21
        %s240 = smul.u32 6, %s21
        %s241 = smul.u32 6, %s21
        %v242 = vld [vmem:[#allocation2] sm:$0xff]
        %v243 = vld [vmem:[#allocation2 + $0x8] sm:$0xff]
        %v244 = vld [vmem:[#allocation2 + $0x10] sm:$0xff]
        %v245 = vld [vmem:[#allocation2 + $0x18] sm:$0xff]
        %v246 = vld [vmem:[#allocation2 + $0x20] sm:$0xff]
        %v247 = vld [vmem:[#allocation2 + $0x28] sm:$0xff]
        %v248 = vld [vmem:[#allocation2 + $0x30] sm:$0xff]
        %v249 = vld [vmem:[#allocation2 + $0x38] sm:$0xff]
        %v250 = vld [vmem:[#allocation2 + $0x40] sm:$0xff]
        %v251 = vld [vmem:[#allocation2 + $0x48] sm:$0xff]
        %v252 = vld [vmem:[#allocation2 + $0x50] sm:$0xff]
        %v253 = vld [vmem:[#allocation2 + $0x58] sm:$0xff]
        %v254 = vld [vmem:[#allocation2 + $0x60] sm:$0xff]
        %v255 = vld [vmem:[#allocation2 + $0x68] sm:$0xff]
        %v256 = vld [vmem:[#allocation2 + $0x70] sm:$0xff]
        %v257 = vld [vmem:[#allocation2 + $0x78] sm:$0xff]
        %v258 = vld [vmem:[#allocation2 + $0x80] sm:$0xff]
        %v259 = vld [vmem:[#allocation2 + $0x88] sm:$0xff]
        %v260 = vld [vmem:[#allocation2 + $0x90] sm:$0xff]
        %v261 = vld [vmem:[#allocation2 + $0x98] sm:$0xff]
        %v262 = vld [vmem:[#allocation2 + $0xa0] sm:$0xff]
        %v263 = vld [vmem:[#allocation2 + $0xa8] sm:$0xff]
        %v264 = vld [vmem:[#allocation2 + $0xb0] sm:$0xff]
        %v265 = vld [vmem:[#allocation2 + $0xb8] sm:$0xff]
        %v266 = vld [vmem:[#allocation2 + $0xc0] sm:$0xff]
        %v267 = vld [vmem:[#allocation2 + $0xc8] sm:$0xff]
        %v268 = vld [vmem:[#allocation2 + $0xd0] sm:$0xff]
        %v269 = vld [vmem:[#allocation2 + $0xd8] sm:$0xff]
        %v270 = vld [vmem:[#allocation2 + $0xe0] sm:$0xff]
        %v271 = vld [vmem:[#allocation2 + $0xe8] sm:$0xff]
        %v272 = vld [vmem:[#allocation2 + $0xf0] sm:$0xff]
        %v273 = vld [vmem:[#allocation2 + $0xf8] sm:$0xff]
        %v274 = vld [vmem:[#allocation2 + $0x100] sm:$0xff]
        %v275 = vld [vmem:[#allocation2 + $0x108] sm:$0xff]
        %v276 = vld [vmem:[#allocation2 + $0x110] sm:$0xff]
        %v277 = vld [vmem:[#allocation2 + $0x118] sm:$0xff]
        %v278 = vld [vmem:[#allocation2 + $0x120] sm:$0xff]
        %v279 = vld [vmem:[#allocation2 + $0x128] sm:$0xff]
        %v280 = vld [vmem:[#allocation2 + $0x130] sm:$0xff]
        %v281 = vld [vmem:[#allocation2 + $0x138] sm:$0xff]
        %v282 = vld [vmem:[#allocation2 + $0x140] sm:$0xff]
        %v283 = vld [vmem:[#allocation2 + $0x148] sm:$0xff]
        %v284 = vld [vmem:[#allocation2 + $0x150] sm:$0xff]
        %v285 = vld [vmem:[#allocation2 + $0x158] sm:$0xff]
        %v286 = vld [vmem:[#allocation2 + $0x160] sm:$0xff]
        %v287 = vld [vmem:[#allocation2 + $0x168] sm:$0xff]
        %v288 = vld [vmem:[#allocation2 + $0x170] sm:$0xff]
        %v289 = vld [vmem:[#allocation2 + $0x178] sm:$0xff]
        %v290 = vld [vmem:[#allocation2 + $0x180] sm:$0xff]
        %v291 = vld [vmem:[#allocation2 + $0x188] sm:$0xff]
        %v292 = vld [vmem:[#allocation2 + $0x190] sm:$0xff]
        %v293 = vld [vmem:[#allocation2 + $0x198] sm:$0xff]
        %v294 = vld [vmem:[#allocation2 + $0x1a0] sm:$0xff]
        %v295 = vld [vmem:[#allocation2 + $0x1a8] sm:$0xff]
        %v296 = vld [vmem:[#allocation2 + $0x1b0] sm:$0xff]
        %v297 = vld [vmem:[#allocation2 + $0x1b8] sm:$0xff]
        %v298 = vld [vmem:[#allocation2 + $0x1c0] sm:$0xff]
        %v299 = vld [vmem:[#allocation2 + $0x1c8] sm:$0xff]
        %v300 = vld [vmem:[#allocation2 + $0x1d0] sm:$0xff]
        %v301 = vld [vmem:[#allocation2 + $0x1d8] sm:$0xff]
        %v302 = vld [vmem:[#allocation2 + $0x1e0] sm:$0xff]
        %v303 = vld [vmem:[#allocation2 + $0x1e8] sm:$0xff]
        %v304 = vld [vmem:[#allocation2 + $0x1f0] sm:$0xff]
        %v305 = vld [vmem:[#allocation2 + $0x1f8] sm:$0xff]
        %v306 = vld [vmem:[#allocation2 + $0x200] sm:$0xff]
        %v307 = vld [vmem:[#allocation2 + $0x208] sm:$0xff]
        %v308 = vld [vmem:[#allocation2 + $0x210] sm:$0xff]
        %v309 = vld [vmem:[#allocation2 + $0x218] sm:$0xff]
        %v310 = vld [vmem:[#allocation2 + $0x220] sm:$0xff]
        %v311 = vld [vmem:[#allocation2 + $0x228] sm:$0xff]
        %v312 = vld [vmem:[#allocation2 + $0x230] sm:$0xff]
        %v313 = vld [vmem:[#allocation2 + $0x238] sm:$0xff]
        %v314 = vld [vmem:[#allocation2 + $0x240] sm:$0xf]
        %v315 = vld [vmem:[#allocation2 + $0x248] sm:$0xf]
        %v316 = vld [vmem:[#allocation2 + $0x250] sm:$0xf]
        %v317 = vld [vmem:[%s202] sm:$0xff]
        %v318 = vld [vmem:[%s202 + $0x8] sm:$0xff]
        %v319 = vld [vmem:[%s202 + $0x10] sm:$0xff]
        %v320 = vld [vmem:[%s202 + $0x18] sm:$0xff]
        %v321 = vld [vmem:[%s202 + $0x20] sm:$0xff]
        %v322 = vld [vmem:[%s202 + $0x28] sm:$0xff]
        %v323 = vld [vmem:[%s202 + $0x30] sm:$0xff]
        %v324 = vld [vmem:[%s202 + $0x38] sm:$0xff]
        %v325 = vld [vmem:[%s202 + $0x40] sm:$0xff]
        %v326 = vld [vmem:[%s202 + $0x48] sm:$0xff]
        %v327 = vld [vmem:[%s202 + $0x50] sm:$0xff]
        %v328 = vld [vmem:[%s202 + $0x58] sm:$0xff]
        %v329 = vld [vmem:[%s202 + $0x60] sm:$0xff]
        %v330 = vld [vmem:[%s202 + $0x68] sm:$0xff]
        %v331 = vld [vmem:[%s202 + $0x70] sm:$0xff]
        %v332 = vld [vmem:[%s202 + $0x78] sm:$0xff]
        %v333 = vld [vmem:[%s202 + $0x80] sm:$0xff]
        %v334 = vld [vmem:[%s202 + $0x88] sm:$0xff]
        %v335 = vld [vmem:[%s202 + $0x90] sm:$0xff]
        %v336 = vld [vmem:[%s202 + $0x98] sm:$0xff]
        %v337 = vld [vmem:[%s202 + $0xa0] sm:$0xff]
        %v338 = vld [vmem:[%s202 + $0xa8] sm:$0xff]
        %v339 = vld [vmem:[%s202 + $0xb0] sm:$0xff]
        %v340 = vld [vmem:[%s202 + $0xb8] sm:$0xff]
        %v341 = vld [vmem:[%s202 + $0xc0] sm:$0xff]
        %v342 = vld [vmem:[%s202 + $0xc8] sm:$0xff]
        %v343 = vld [vmem:[%s202 + $0xd0] sm:$0xff]
        %v344 = vld [vmem:[%s202 + $0xd8] sm:$0xff]
        %v345 = vld [vmem:[%s202 + $0xe0] sm:$0xff]
        %v346 = vld [vmem:[%s202 + $0xe8] sm:$0xff]
        %v347 = vld [vmem:[%s202 + $0xf0] sm:$0xff]
        %v348 = vld [vmem:[%s202 + $0xf8] sm:$0xff]
        %v349 = vld [vmem:[%s202 + $0x100] sm:$0xff]
        %v350 = vld [vmem:[%s202 + $0x108] sm:$0xff]
        %v351 = vld [vmem:[%s202 + $0x110] sm:$0xff]
        %v352 = vld [vmem:[%s202 + $0x118] sm:$0xff]
        %v353 = vld [vmem:[%s202 + $0x120] sm:$0xff]
        %v354 = vld [vmem:[%s202 + $0x128] sm:$0xff]
        %v355 = vld [vmem:[%s202 + $0x130] sm:$0xff]
        %v356 = vld [vmem:[%s202 + $0x138] sm:$0xff]
        %v357 = vld [vmem:[%s202 + $0x140] sm:$0xff]
        %v358 = vld [vmem:[%s202 + $0x148] sm:$0xff]
        %v359 = vld [vmem:[%s202 + $0x150] sm:$0xff]
        %v360 = vld [vmem:[%s202 + $0x158] sm:$0xff]
        %v361 = vld [vmem:[%s202 + $0x160] sm:$0xff]
        %v362 = vld [vmem:[%s202 + $0x168] sm:$0xff]
        %v363 = vld [vmem:[%s202 + $0x170] sm:$0xff]
        %v364 = vld [vmem:[%s202 + $0x178] sm:$0xff]
        %v365 = vld [vmem:[%s202 + $0x180] sm:$0xff]
        %v366 = vld [vmem:[%s202 + $0x188] sm:$0xff]
        %v367 = vld [vmem:[%s202 + $0x190] sm:$0xff]
        %v368 = vld [vmem:[%s202 + $0x198] sm:$0xff]
        %v369 = vld [vmem:[%s202 + $0x1a0] sm:$0xff]
        %v370 = vld [vmem:[%s202 + $0x1a8] sm:$0xff]
        %v371 = vld [vmem:[%s202 + $0x1b0] sm:$0xff]
        %v372 = vld [vmem:[%s202 + $0x1b8] sm:$0xff]
        %v373 = vld [vmem:[%s202 + $0x1c0] sm:$0xff]
        %v374 = vld [vmem:[%s202 + $0x1c8] sm:$0xff]
        %v375 = vld [vmem:[%s202 + $0x1d0] sm:$0xff]
        %v376 = vld [vmem:[%s202 + $0x1d8] sm:$0xff]
        %v377 = vld [vmem:[%s202 + $0x1e0] sm:$0xff]
        %v378 = vld [vmem:[%s202 + $0x1e8] sm:$0xff]
        %v379 = vld [vmem:[%s202 + $0x1f0] sm:$0xff]
        %v380 = vld [vmem:[%s202 + $0x1f8] sm:$0xff]
        %v381 = vld [vmem:[%s202 + $0x200] sm:$0xff]
        %v382 = vld [vmem:[%s202 + $0x208] sm:$0xff]
        %v383 = vld [vmem:[%s202 + $0x210] sm:$0xff]
        %v384 = vld [vmem:[%s202 + $0x218] sm:$0xff]
        %v385 = vld [vmem:[%s202 + $0x220] sm:$0xff]
        %v386 = vld [vmem:[%s202 + $0x228] sm:$0xff]
        %v387 = vld [vmem:[%s202 + $0x230] sm:$0xff]
        %v388 = vld [vmem:[%s202 + $0x238] sm:$0xff]
        %v389 = vld [vmem:[%s202 + $0x240] sm:$0xff]
        %v390 = vld [vmem:[%s202 + $0x248] sm:$0xff]
        %v391 = vld [vmem:[%s202 + $0x250] sm:$0xff]
        %v392 = vld [vmem:[%s202 + $0x258] sm:$0xff]
        %v393 = vld [vmem:[%s202 + $0x260] sm:$0xff]
        %v394 = vld [vmem:[%s202 + $0x268] sm:$0xff]
        %v395 = vld [vmem:[%s202 + $0x270] sm:$0xff]
        %v396 = vld [vmem:[%s202 + $0x278] sm:$0xff]
        %v397 = vld [vmem:[%s202 + $0x280] sm:$0xff]
        %v398 = vld [vmem:[%s202 + $0x288] sm:$0xff]
        %v399 = vld [vmem:[%s202 + $0x290] sm:$0xff]
        %v400 = vld [vmem:[%s202 + $0x298] sm:$0xff]
        %v401 = vld [vmem:[%s202 + $0x2a0] sm:$0xff]
        %v402 = vld [vmem:[%s202 + $0x2a8] sm:$0xff]
        %v403 = vld [vmem:[%s202 + $0x2b0] sm:$0xff]
        %v404 = vld [vmem:[%s202 + $0x2b8] sm:$0xff]
        %v405 = vld [vmem:[%s202 + $0x2c0] sm:$0xff]
        %v406 = vld [vmem:[%s202 + $0x2c8] sm:$0xff]
        %v407 = vld [vmem:[%s202 + $0x2d0] sm:$0xff]
        %v408 = vld [vmem:[%s202 + $0x2d8] sm:$0xff]
        %v409 = vld [vmem:[%s202 + $0x2e0] sm:$0xff]
        %v410 = vld [vmem:[%s202 + $0x2e8] sm:$0xff]
        %v411 = vld [vmem:[%s202 + $0x2f0] sm:$0xff]
        %v412 = vld [vmem:[%s202 + $0x2f8] sm:$0xff]
        %v413 = vld [vmem:[%s202 + $0x300] sm:$0xff]
        %v414 = vld [vmem:[%s202 + $0x308] sm:$0xff]
        %v415 = vld [vmem:[%s202 + $0x310] sm:$0xff]
        %v416 = vld [vmem:[%s202 + $0x318] sm:$0xff]
        %v417 = vld [vmem:[%s202 + $0x320] sm:$0xff]
        %v418 = vld [vmem:[%s202 + $0x328] sm:$0xff]
        %v419 = vld [vmem:[%s202 + $0x330] sm:$0xff]
        %v420 = vld [vmem:[%s202 + $0x338] sm:$0xff]
        %v421 = vld [vmem:[%s202 + $0x340] sm:$0xff]
        %v422 = vld [vmem:[%s202 + $0x348] sm:$0xff]
        %v423 = vld [vmem:[%s202 + $0x350] sm:$0xff]
        %v424 = vld [vmem:[%s202 + $0x358] sm:$0xff]
        %v425 = vld [vmem:[%s202 + $0x360] sm:$0xff]
        %v426 = vld [vmem:[%s202 + $0x368] sm:$0xff]
        %v427 = vld [vmem:[%s202 + $0x370] sm:$0xff]
        %v428 = vld [vmem:[%s202 + $0x378] sm:$0xff]
        %v429 = vld [vmem:[%s202 + $0x380] sm:$0xff]
        %v430 = vld [vmem:[%s202 + $0x388] sm:$0xff]
        %v431 = vld [vmem:[%s202 + $0x390] sm:$0xff]
        %v432 = vld [vmem:[%s202 + $0x398] sm:$0xff]
        %v433 = vld [vmem:[%s202 + $0x3a0] sm:$0xff]
        %v434 = vld [vmem:[%s202 + $0x3a8] sm:$0xff]
        %v435 = vld [vmem:[%s202 + $0x3b0] sm:$0xff]
        %v436 = vld [vmem:[%s202 + $0x3b8] sm:$0xff]
        %v437 = vld [vmem:[%s202 + $0x3c0] sm:$0xff]
        %v438 = vld [vmem:[%s202 + $0x3c8] sm:$0xff]
        %v439 = vld [vmem:[%s202 + $0x3d0] sm:$0xff]
        %v440 = vld [vmem:[%s202 + $0x3d8] sm:$0xff]
        %v441 = vld [vmem:[%s202 + $0x3e0] sm:$0xff]
        %v442 = vld [vmem:[%s202 + $0x3e8] sm:$0xff]
        %v443 = vld [vmem:[%s202 + $0x3f0] sm:$0xff]
        %v444 = vld [vmem:[%s202 + $0x3f8] sm:$0xff]
        %v445 = vld [vmem:[%s202 + $0x400] sm:$0xff]
        %v446 = vld [vmem:[%s202 + $0x408] sm:$0xff]
        %v447 = vld [vmem:[%s202 + $0x410] sm:$0xff]
        %v448 = vld [vmem:[%s202 + $0x418] sm:$0xff]
        %v449 = vld [vmem:[%s202 + $0x420] sm:$0xff]
        %v450 = vld [vmem:[%s202 + $0x428] sm:$0xff]
        %v451 = vld [vmem:[%s202 + $0x430] sm:$0xff]
        %v452 = vld [vmem:[%s202 + $0x438] sm:$0xff]
        %v453 = vld [vmem:[%s202 + $0x440] sm:$0xff]
        %v454 = vld [vmem:[%s202 + $0x448] sm:$0xff]
        %v455 = vld [vmem:[%s202 + $0x450] sm:$0xff]
        %v456 = vld [vmem:[%s202 + $0x458] sm:$0xff]
        %v457 = vld [vmem:[%s202 + $0x460] sm:$0xff]
        %v458 = vld [vmem:[%s202 + $0x468] sm:$0xff]
        %v459 = vld [vmem:[%s202 + $0x470] sm:$0xff]
        %v460 = vld [vmem:[%s202 + $0x478] sm:$0xff]
        %v461 = vld [vmem:[%s202 + $0x480] sm:$0xff]
        %v462 = vld [vmem:[%s202 + $0x488] sm:$0xff]
        %v463 = vld [vmem:[%s202 + $0x490] sm:$0xff]
        %v464 = vld [vmem:[%s202 + $0x498] sm:$0xff]
        %v465 = vld [vmem:[%s202 + $0x4a0] sm:$0xff]
        %v466 = vld [vmem:[%s202 + $0x4a8] sm:$0xff]
        %v467 = vld [vmem:[%s202 + $0x4b0] sm:$0xff]
        %v468 = vld [vmem:[%s202 + $0x4b8] sm:$0xff]
        %v469 = vld [vmem:[%s202 + $0x4c0] sm:$0xff]
        %v470 = vld [vmem:[%s202 + $0x4c8] sm:$0xff]
        %v471 = vld [vmem:[%s202 + $0x4d0] sm:$0xff]
        %v472 = vld [vmem:[%s202 + $0x4d8] sm:$0xff]
        %v473 = vld [vmem:[%s202 + $0x4e0] sm:$0xff]
        %v474 = vld [vmem:[%s202 + $0x4e8] sm:$0xff]
        %v475 = vld [vmem:[%s202 + $0x4f0] sm:$0xff]
        %v476 = vld [vmem:[%s202 + $0x4f8] sm:$0xff]
        %v477 = vld [vmem:[%s202 + $0x500] sm:$0xff]
        %v478 = vld [vmem:[%s202 + $0x508] sm:$0xff]
        %v479 = vld [vmem:[%s202 + $0x510] sm:$0xff]
        %v480 = vld [vmem:[%s202 + $0x518] sm:$0xff]
        %v481 = vld [vmem:[%s202 + $0x520] sm:$0xff]
        %v482 = vld [vmem:[%s202 + $0x528] sm:$0xff]
        %v483 = vld [vmem:[%s202 + $0x530] sm:$0xff]
        %v484 = vld [vmem:[%s202 + $0x538] sm:$0xff]
        %v485 = vld [vmem:[%s202 + $0x540] sm:$0xff]
        %v486 = vld [vmem:[%s202 + $0x548] sm:$0xff]
        %v487 = vld [vmem:[%s202 + $0x550] sm:$0xff]
        %v488 = vld [vmem:[%s202 + $0x558] sm:$0xff]
        %v489 = vld [vmem:[%s202 + $0x560] sm:$0xff]
        %v490 = vld [vmem:[%s202 + $0x568] sm:$0xff]
        %v491 = vld [vmem:[%s202 + $0x570] sm:$0xff]
        %v492 = vld [vmem:[%s202 + $0x578] sm:$0xff]
        %v493 = vld [vmem:[%s202 + $0x580] sm:$0xff]
        %v494 = vld [vmem:[%s202 + $0x588] sm:$0xff]
        %v495 = vld [vmem:[%s202 + $0x590] sm:$0xff]
        %v496 = vld [vmem:[%s202 + $0x598] sm:$0xff]
        %v497 = vld [vmem:[%s202 + $0x5a0] sm:$0xff]
        %v498 = vld [vmem:[%s202 + $0x5a8] sm:$0xff]
        %v499 = vld [vmem:[%s202 + $0x5b0] sm:$0xff]
        %v500 = vld [vmem:[%s202 + $0x5b8] sm:$0xff]
        %v501 = vld [vmem:[%s202 + $0x5c0] sm:$0xff]
        %v502 = vld [vmem:[%s202 + $0x5c8] sm:$0xff]
        %v503 = vld [vmem:[%s202 + $0x5d0] sm:$0xff]
        %v504 = vld [vmem:[%s202 + $0x5d8] sm:$0xff]
        %v505 = vld [vmem:[%s202 + $0x5e0] sm:$0xff]
        %v506 = vld [vmem:[%s202 + $0x5e8] sm:$0xff]
        %v507 = vld [vmem:[%s202 + $0x5f0] sm:$0xff]
        %v508 = vld [vmem:[%s202 + $0x5f8] sm:$0xff]
        %v509 = vld [vmem:[%s202 + $0x600] sm:$0xff]
        %v510 = vld [vmem:[%s202 + $0x608] sm:$0xff]
        %v511 = vld [vmem:[%s202 + $0x610] sm:$0xff]
        %v512 = vld [vmem:[%s202 + $0x618] sm:$0xff]
        %v513 = vld [vmem:[%s202 + $0x620] sm:$0xff]
        %v514 = vld [vmem:[%s202 + $0x628] sm:$0xff]
        %v515 = vld [vmem:[%s202 + $0x630] sm:$0xff]
        %v516 = vld [vmem:[%s202 + $0x638] sm:$0xff]
        %v517 = vld [vmem:[%s202 + $0x640] sm:$0xff]
        %v518 = vld [vmem:[%s202 + $0x648] sm:$0xff]
        %v519 = vld [vmem:[%s202 + $0x650] sm:$0xff]
        %v520 = vld [vmem:[%s202 + $0x658] sm:$0xff]
        %v521 = vld [vmem:[%s202 + $0x660] sm:$0xff]
        %v522 = vld [vmem:[%s202 + $0x668] sm:$0xff]
        %v523 = vld [vmem:[%s202 + $0x670] sm:$0xff]
        %v524 = vld [vmem:[%s202 + $0x678] sm:$0xff]
        %v525 = vld [vmem:[%s202 + $0x680] sm:$0xff]
        %v526 = vld [vmem:[%s202 + $0x688] sm:$0xff]
        %v527 = vld [vmem:[%s202 + $0x690] sm:$0xff]
        %v528 = vld [vmem:[%s202 + $0x698] sm:$0xff]
        %v529 = vld [vmem:[%s202 + $0x6a0] sm:$0xff]
        %v530 = vld [vmem:[%s202 + $0x6a8] sm:$0xff]
        %v531 = vld [vmem:[%s202 + $0x6b0] sm:$0xff]
        %v532 = vld [vmem:[%s202 + $0x6b8] sm:$0xff]
        %v533 = vld [vmem:[%s202 + $0x6c0] sm:$0xff]
        %v534 = vld [vmem:[%s202 + $0x6c8] sm:$0xff]
        %v535 = vld [vmem:[%s202 + $0x6d0] sm:$0xff]
        %v536 = vld [vmem:[%s202 + $0x6d8] sm:$0xff]
        %v537 = vld [vmem:[%s202 + $0x6e0] sm:$0xff]
        %v538 = vld [vmem:[%s202 + $0x6e8] sm:$0xff]
        %v539 = vld [vmem:[%s202 + $0x6f0] sm:$0xff]
        %v540 = vld [vmem:[%s202 + $0x6f8] sm:$0xff]
        %v541 = vld [vmem:[%s202 + $0x700] sm:$0xff]
        %v542 = vld [vmem:[%s202 + $0x708] sm:$0xff]
        %v543 = vld [vmem:[%s202 + $0x710] sm:$0xff]
        %v544 = vld [vmem:[%s202 + $0x718] sm:$0xff]
        %v545 = vld [vmem:[%s202 + $0x720] sm:$0xff]
        %v546 = vld [vmem:[%s202 + $0x728] sm:$0xff]
        %v547 = vld [vmem:[%s202 + $0x730] sm:$0xff]
        %v548 = vld [vmem:[%s202 + $0x738] sm:$0xff]
        %v549 = vld [vmem:[%s202 + $0x740] sm:$0xff]
        %v550 = vld [vmem:[%s202 + $0x748] sm:$0xff]
        %v551 = vld [vmem:[%s202 + $0x750] sm:$0xff]
        %v552 = vld [vmem:[%s202 + $0x758] sm:$0xff]
        %v553 = vld [vmem:[%s202 + $0x760] sm:$0xff]
        %v554 = vld [vmem:[%s202 + $0x768] sm:$0xff]
        %v555 = vld [vmem:[%s202 + $0x770] sm:$0xff]
        %v556 = vld [vmem:[%s202 + $0x778] sm:$0xff]
        %v557 = vld [vmem:[%s202 + $0x780] sm:$0xff]
        %v558 = vld [vmem:[%s202 + $0x788] sm:$0xff]
        %v559 = vld [vmem:[%s202 + $0x790] sm:$0xff]
        %v560 = vld [vmem:[%s202 + $0x798] sm:$0xff]
        %v561 = vld [vmem:[%s202 + $0x7a0] sm:$0xff]
        %v562 = vld [vmem:[%s202 + $0x7a8] sm:$0xff]
        %v563 = vld [vmem:[%s202 + $0x7b0] sm:$0xff]
        %v564 = vld [vmem:[%s202 + $0x7b8] sm:$0xff]
        %v565 = vld [vmem:[%s202 + $0x7c0] sm:$0xff]
        %v566 = vld [vmem:[%s202 + $0x7c8] sm:$0xff]
        %v567 = vld [vmem:[%s202 + $0x7d0] sm:$0xff]
        %v568 = vld [vmem:[%s202 + $0x7d8] sm:$0xff]
        %v569 = vld [vmem:[%s202 + $0x7e0] sm:$0xff]
        %v570 = vld [vmem:[%s202 + $0x7e8] sm:$0xff]
        %v571 = vld [vmem:[%s202 + $0x7f0] sm:$0xff]
        %v572 = vld [vmem:[%s202 + $0x7f8] sm:$0xff]
        %v573 = vld [vmem:[%s202 + $0x800] sm:$0xff]
        %v574 = vld [vmem:[%s202 + $0x808] sm:$0xff]
        %v575 = vld [vmem:[%s202 + $0x810] sm:$0xff]
        %v576 = vld [vmem:[%s202 + $0x818] sm:$0xff]
        %v577 = vld [vmem:[%s202 + $0x820] sm:$0xff]
        %v578 = vld [vmem:[%s202 + $0x828] sm:$0xff]
        %v579 = vld [vmem:[%s202 + $0x830] sm:$0xff]
        %v580 = vld [vmem:[%s202 + $0x838] sm:$0xff]
        %v581 = vld [vmem:[%s202 + $0x840] sm:$0xff]
        %v582 = vld [vmem:[%s202 + $0x848] sm:$0xff]
        %v583 = vld [vmem:[%s202 + $0x850] sm:$0xff]
        %v584 = vld [vmem:[%s202 + $0x858] sm:$0xff]
        %v585 = vld [vmem:[%s202 + $0x860] sm:$0xff]
        %v586 = vld [vmem:[%s202 + $0x868] sm:$0xff]
        %v587 = vld [vmem:[%s202 + $0x870] sm:$0xff]
        %v588 = vld [vmem:[%s202 + $0x878] sm:$0xff]
        %v589 = vld [vmem:[%s202 + $0x880] sm:$0xff]
        %v590 = vld [vmem:[%s202 + $0x888] sm:$0xff]
        %v591 = vld [vmem:[%s202 + $0x890] sm:$0xff]
        %v592 = vld [vmem:[%s202 + $0x898] sm:$0xff]
        %v593 = vld [vmem:[%s202 + $0x8a0] sm:$0xff]
        %v594 = vld [vmem:[%s202 + $0x8a8] sm:$0xff]
        %v595 = vld [vmem:[%s202 + $0x8b0] sm:$0xff]
        %v596 = vld [vmem:[%s202 + $0x8b8] sm:$0xff]
        %v597 = vld [vmem:[%s202 + $0x8c0] sm:$0xff]
        %v598 = vld [vmem:[%s202 + $0x8c8] sm:$0xff]
        %v599 = vld [vmem:[%s202 + $0x8d0] sm:$0xff]
        %v600 = vld [vmem:[%s202 + $0x8d8] sm:$0xff]
        %v601 = vld [vmem:[%s202 + $0x8e0] sm:$0xff]
        %v602 = vld [vmem:[%s202 + $0x8e8] sm:$0xff]
        %v603 = vld [vmem:[%s202 + $0x8f0] sm:$0xff]
        %v604 = vld [vmem:[%s202 + $0x8f8] sm:$0xff]
        %v605 = vld [vmem:[%s211] sm:$0x3f]
        %v607 = vlaneseq
        %v608 = vshrl.u32 %v607, 7
        %v609 = vsub.s32 0, %v608
        %v610 = vrot.slane %v605, %v609
        %v611 = vlaneseq
        %v612 = vshrl.u32 %v611, 7
        %v613 = vsub.s32 1, %v612
        %v614 = vrot.slane %v605, %v613
        %v615 = vlaneseq
        %v616 = vshrl.u32 %v615, 7
        %v617 = vsub.s32 2, %v616
        %v618 = vrot.slane %v605, %v617
        %v619 = vlaneseq
        %v620 = vshrl.u32 %v619, 7
        %v621 = vsub.s32 3, %v620
        %v622 = vrot.slane %v605, %v621
        %v623 = vlaneseq
        %v624 = vshrl.u32 %v623, 7
        %v625 = vsub.s32 4, %v624
        %v626 = vrot.slane %v605, %v625
        %v627 = vlaneseq
        %v628 = vshrl.u32 %v627, 7
        %v629 = vsub.s32 5, %v628
        %v630 = vrot.slane %v605, %v629
        %637 = vmatprep.subr.mxu0 %v408
        %638 = vmatpush1.msra.mxu0 %v407
        %639 = vmatprep.subr.mxu0 %v402
        %640 = vmatpush1.msra.mxu0 %v401
        %641 = vmatprep.subr.mxu0 %v396
        %642 = vmatpush1.msra.mxu0 %v395
        %643 = vmatprep.subr.mxu0 %v390
        %644 = vmatpush1.msra.mxu0 %v389
        %645 = vmatprep.subr.mxu0 %v384
        %646 = vmatpush1.msra.mxu0 %v383
        %647 = vmatprep.subr.mxu0 %v378
        %648 = vmatpush1.msra.mxu0 %v377
        %649 = vmatprep.subr.mxu0 %v372
        %650 = vmatpush1.msra.mxu0 %v371
        %651 = vmatprep.subr.mxu0 %v366
        %652 = vmatpush1.msra.mxu0 %v365
        %653 = vmatprep.subr.mxu0 %v360
        %654 = vmatpush1.msra.mxu0 %v359
        %655 = vmatprep.subr.mxu0 %v354
        %656 = vmatpush1.msra.mxu0 %v353
        %657 = vmatprep.subr.mxu0 %v348
        %658 = vmatpush1.msra.mxu0 %v347
        %659 = vmatprep.subr.mxu0 %v342
        %660 = vmatpush1.msra.mxu0 %v341
        %661 = vmatprep.subr.mxu0 %v336
        %662 = vmatpush1.msra.mxu0 %v335
        %663 = vmatprep.subr.mxu0 %v330
        %664 = vmatpush1.msra.mxu0 %v329
        %665 = vmatprep.subr.mxu0 %v324
        %666 = vmatpush1.msra.mxu0 %v323
        %667 = vmatprep.subr.mxu0 %v318
        %668 = vmatpush1.msra.mxu0 %v317
        %669 = vmatprep.subr.mxu0 %v504
        %670 = vmatpush2.msra.mxu0 %v503
        %671 = vmatprep.subr.mxu0 %v498
        %672 = vmatpush2.msra.mxu0 %v497
        %673 = vmatprep.subr.mxu0 %v492
        %674 = vmatpush2.msra.mxu0 %v491
        %675 = vmatprep.subr.mxu0 %v486
        %676 = vmatpush2.msra.mxu0 %v485
        %677 = vmatprep.subr.mxu0 %v480
        %678 = vmatpush2.msra.mxu0 %v479
        %679 = vmatprep.subr.mxu0 %v474
        %680 = vmatpush2.msra.mxu0 %v473
        %681 = vmatprep.subr.mxu0 %v468
        %682 = vmatpush2.msra.mxu0 %v467
        %683 = vmatprep.subr.mxu0 %v462
        %684 = vmatpush2.msra.mxu0 %v461
        %685 = vmatprep.subr.mxu0 %v456
        %686 = vmatpush2.msra.mxu0 %v455
        %687 = vmatprep.subr.mxu0 %v450
        %688 = vmatpush2.msra.mxu0 %v449
        %689 = vmatprep.subr.mxu0 %v444
        %690 = vmatpush2.msra.mxu0 %v443
        %691 = vmatprep.subr.mxu0 %v438
        %692 = vmatpush2.msra.mxu0 %v437
        %693 = vmatprep.subr.mxu0 %v432
        %694 = vmatpush2.msra.mxu0 %v431
        %695 = vmatprep.subr.mxu0 %v426
        %696 = vmatpush2.msra.mxu0 %v425
        %697 = vmatprep.subr.mxu0 %v420
        %698 = vmatpush2.msra.mxu0 %v419
        %699 = vmatprep.subr.mxu0 %v414
        %700 = vmatpush2.msra.mxu0 %v413
        %701 = vmatprep.mubr.f32.mxu0 %v243
        %702 = vmatmul.mubr.f32.gmra.mxu0 %v242
        %v703 = vpop.f32.mrf.mxu0
        %v704 = vadd.f32 %v610, %v703
        %v705 = vpop.f32.mrf.mxu0
        %v706 = vadd.f32 %v614, %v705
        %707 = vmatprep.mubr.f32.mxu0 %v246
        %708 = vmatmul.mubr.f32.gmra.mxu0 %v245
        %v709 = vpop.f32.mrf.mxu0
        %v710 = vadd.f32 %v610, %v709
        %v711 = vpop.f32.mrf.mxu0
        %v712 = vadd.f32 %v614, %v711
        %713 = vmatprep.mubr.f32.mxu0 %v249
        %714 = vmatmul.mubr.f32.gmra.mxu0 %v248
        %v715 = vpop.f32.mrf.mxu0
        %v716 = vadd.f32 %v610, %v715
        %v717 = vpop.f32.mrf.mxu0
        %v718 = vadd.f32 %v614, %v717
        %719 = vmatprep.mubr.f32.mxu0 %v252
        %720 = vmatmul.mubr.f32.gmra.mxu0 %v251
        %v721 = vpop.f32.mrf.mxu0
        %v722 = vadd.f32 %v610, %v721
        %v723 = vpop.f32.mrf.mxu0
        %v724 = vadd.f32 %v614, %v723
        %725 = vmatprep.mubr.f32.mxu0 %v255
        %726 = vmatmul.mubr.f32.gmra.mxu0 %v254
        %v727 = vpop.f32.mrf.mxu0
        %v728 = vadd.f32 %v610, %v727
        %v729 = vpop.f32.mrf.mxu0
        %v730 = vadd.f32 %v614, %v729
        %731 = vmatprep.mubr.f32.mxu0 %v258
        %732 = vmatmul.mubr.f32.gmra.mxu0 %v257
        %v733 = vpop.f32.mrf.mxu0
        %v734 = vadd.f32 %v610, %v733
        %v735 = vpop.f32.mrf.mxu0
        %v736 = vadd.f32 %v614, %v735
        %737 = vmatprep.mubr.f32.mxu0 %v261
        %738 = vmatmul.mubr.f32.gmra.mxu0 %v260
        %v739 = vpop.f32.mrf.mxu0
        %v740 = vadd.f32 %v610, %v739
        %v741 = vpop.f32.mrf.mxu0
        %v742 = vadd.f32 %v614, %v741
        %743 = vmatprep.mubr.f32.mxu0 %v264
        %744 = vmatmul.mubr.f32.gmra.mxu0 %v263
        %v745 = vpop.f32.mrf.mxu0
        %v746 = vadd.f32 %v610, %v745
        %v747 = vpop.f32.mrf.mxu0
        %v748 = vadd.f32 %v614, %v747
        %749 = vmatprep.mubr.f32.mxu0 %v267
        %750 = vmatmul.mubr.f32.gmra.mxu0 %v266
        %v751 = vpop.f32.mrf.mxu0
        %v752 = vadd.f32 %v610, %v751
        %v753 = vpop.f32.mrf.mxu0
        %v754 = vadd.f32 %v614, %v753
        %755 = vmatprep.mubr.f32.mxu0 %v270
        %756 = vmatmul.mubr.f32.gmra.mxu0 %v269
        %v757 = vpop.f32.mrf.mxu0
        %v758 = vadd.f32 %v610, %v757
        %v759 = vpop.f32.mrf.mxu0
        %v760 = vadd.f32 %v614, %v759
        %761 = vmatprep.mubr.f32.mxu0 %v273
        %762 = vmatmul.mubr.f32.gmra.mxu0 %v272
        %v763 = vpop.f32.mrf.mxu0
        %v764 = vadd.f32 %v610, %v763
        %v765 = vpop.f32.mrf.mxu0
        %v766 = vadd.f32 %v614, %v765
        %767 = vmatprep.mubr.f32.mxu0 %v276
        %768 = vmatmul.mubr.f32.gmra.mxu0 %v275
        %v769 = vpop.f32.mrf.mxu0
        %v770 = vadd.f32 %v610, %v769
        %v771 = vpop.f32.mrf.mxu0
        %v772 = vadd.f32 %v614, %v771
        %773 = vmatprep.mubr.f32.mxu0 %v279
        %774 = vmatmul.mubr.f32.gmra.mxu0 %v278
        %v775 = vpop.f32.mrf.mxu0
        %v776 = vadd.f32 %v610, %v775
        %v777 = vpop.f32.mrf.mxu0
        %v778 = vadd.f32 %v614, %v777
        %779 = vmatprep.mubr.f32.mxu0 %v282
        %780 = vmatmul.mubr.f32.gmra.mxu0 %v281
        %v781 = vpop.f32.mrf.mxu0
        %v782 = vadd.f32 %v610, %v781
        %v783 = vpop.f32.mrf.mxu0
        %v784 = vadd.f32 %v614, %v783
        %785 = vmatprep.mubr.f32.mxu0 %v285
        %786 = vmatmul.mubr.f32.gmra.mxu0 %v284
        %v787 = vpop.f32.mrf.mxu0
        %v788 = vadd.f32 %v610, %v787
        %v789 = vpop.f32.mrf.mxu0
        %v790 = vadd.f32 %v614, %v789
        %791 = vmatprep.mubr.f32.mxu0 %v288
        %792 = vmatmul.mubr.f32.gmra.mxu0 %v287
        %v793 = vpop.f32.mrf.mxu0
        %v794 = vadd.f32 %v610, %v793
        %v795 = vpop.f32.mrf.mxu0
        %v796 = vadd.f32 %v614, %v795
        %797 = vmatprep.mubr.f32.mxu0 %v291
        %798 = vmatmul.mubr.f32.gmra.mxu0 %v290
        %v799 = vpop.f32.mrf.mxu0
        %v800 = vadd.f32 %v610, %v799
        %v801 = vpop.f32.mrf.mxu0
        %v802 = vadd.f32 %v614, %v801
        %803 = vmatprep.mubr.f32.mxu0 %v294
        %804 = vmatmul.mubr.f32.gmra.mxu0 %v293
        %v805 = vpop.f32.mrf.mxu0
        %v806 = vadd.f32 %v610, %v805
        %v807 = vpop.f32.mrf.mxu0
        %v808 = vadd.f32 %v614, %v807
        %809 = vmatprep.mubr.f32.mxu0 %v297
        %810 = vmatmul.mubr.f32.gmra.mxu0 %v296
        %v811 = vpop.f32.mrf.mxu0
        %v812 = vadd.f32 %v610, %v811
        %v813 = vpop.f32.mrf.mxu0
        %v814 = vadd.f32 %v614, %v813
        %815 = vmatprep.mubr.f32.mxu0 %v300
        %816 = vmatmul.mubr.f32.gmra.mxu0 %v299
        %v817 = vpop.f32.mrf.mxu0
        %v818 = vadd.f32 %v610, %v817
        %v819 = vpop.f32.mrf.mxu0
        %v820 = vadd.f32 %v614, %v819
        %821 = vmatprep.mubr.f32.mxu0 %v303
        %822 = vmatmul.mubr.f32.gmra.mxu0 %v302
        %v823 = vpop.f32.mrf.mxu0
        %v824 = vadd.f32 %v610, %v823
        %v825 = vpop.f32.mrf.mxu0
        %v826 = vadd.f32 %v614, %v825
        %827 = vmatprep.mubr.f32.mxu0 %v306
        %828 = vmatmul.mubr.f32.gmra.mxu0 %v305
        %v829 = vpop.f32.mrf.mxu0
        %v830 = vadd.f32 %v610, %v829
        %v831 = vpop.f32.mrf.mxu0
        %v832 = vadd.f32 %v614, %v831
        %833 = vmatprep.mubr.f32.mxu0 %v309
        %834 = vmatmul.mubr.f32.gmra.mxu0 %v308
        %v835 = vpop.f32.mrf.mxu0
        %v836 = vadd.f32 %v610, %v835
        %v837 = vpop.f32.mrf.mxu0
        %v838 = vadd.f32 %v614, %v837
        %839 = vmatprep.mubr.f32.mxu0 %v312
        %840 = vmatmul.mubr.f32.gmra.mxu0 %v311
        %v841 = vpop.f32.mrf.mxu0
        %v842 = vadd.f32 %v610, %v841
        %v843 = vpop.f32.mrf.mxu0
        %v844 = vadd.f32 %v614, %v843
        %845 = vmatprep.mubr.f32.mxu0 %v315
        %846 = vmatmul.mubr.f32.gmra.mxu0 %v314
        %v847 = vpop.f32.mrf.mxu0
        %v848 = vadd.f32 %v610, %v847
        %v849 = vpop.f32.mrf.mxu0
        %v850 = vadd.f32 %v614, %v849
        %851 = vdwg.mxu0
        %852 = vmatprep.subr.mxu0 %v600
        %853 = vmatpush1.msra.mxu0 %v599
        %854 = vmatprep.subr.mxu0 %v594
        %855 = vmatpush1.msra.mxu0 %v593
        %856 = vmatprep.subr.mxu0 %v588
        %857 = vmatpush1.msra.mxu0 %v587
        %858 = vmatprep.subr.mxu0 %v582
        %859 = vmatpush1.msra.mxu0 %v581
        %860 = vmatprep.subr.mxu0 %v576
        %861 = vmatpush1.msra.mxu0 %v575
        %862 = vmatprep.subr.mxu0 %v570
        %863 = vmatpush1.msra.mxu0 %v569
        %864 = vmatprep.subr.mxu0 %v564
        %865 = vmatpush1.msra.mxu0 %v563
        %866 = vmatprep.subr.mxu0 %v558
        %867 = vmatpush1.msra.mxu0 %v557
        %868 = vmatprep.subr.mxu0 %v552
        %869 = vmatpush1.msra.mxu0 %v551
        %870 = vmatprep.subr.mxu0 %v546
        %871 = vmatpush1.msra.mxu0 %v545
        %872 = vmatprep.subr.mxu0 %v540
        %873 = vmatpush1.msra.mxu0 %v539
        %874 = vmatprep.subr.mxu0 %v534
        %875 = vmatpush1.msra.mxu0 %v533
        %876 = vmatprep.subr.mxu0 %v528
        %877 = vmatpush1.msra.mxu0 %v527
        %878 = vmatprep.subr.mxu0 %v522
        %879 = vmatpush1.msra.mxu0 %v521
        %880 = vmatprep.subr.mxu0 %v516
        %881 = vmatpush1.msra.mxu0 %v515
        %882 = vmatprep.subr.mxu0 %v510
        %883 = vmatpush1.msra.mxu0 %v509
        %884 = vmatprep.subr.mxu0 0.0
        %885 = vmatpush2.msra.mxu0 0.0
        %886 = vmatprep.subr.mxu0 0.0
        %887 = vmatpush2.msra.mxu0 0.0
        %888 = vmatprep.subr.mxu0 0.0
        %889 = vmatpush2.msra.mxu0 0.0
        %890 = vmatprep.subr.mxu0 0.0
        %891 = vmatpush2.msra.mxu0 0.0
        %892 = vmatprep.subr.mxu0 0.0
        %893 = vmatpush2.msra.mxu0 0.0
        %894 = vmatprep.subr.mxu0 0.0
        %895 = vmatpush2.msra.mxu0 0.0
        %896 = vmatprep.subr.mxu0 0.0
        %897 = vmatpush2.msra.mxu0 0.0
        %898 = vmatprep.subr.mxu0 0.0
        %899 = vmatpush2.msra.mxu0 0.0
        %900 = vmatprep.subr.mxu0 0.0
        %901 = vmatpush2.msra.mxu0 0.0
        %902 = vmatprep.subr.mxu0 0.0
        %903 = vmatpush2.msra.mxu0 0.0
        %904 = vmatprep.subr.mxu0 0.0
        %905 = vmatpush2.msra.mxu0 0.0
        %906 = vmatprep.subr.mxu0 0.0
        %907 = vmatpush2.msra.mxu0 0.0
        %908 = vmatprep.subr.mxu0 0.0
        %909 = vmatpush2.msra.mxu0 0.0
        %910 = vmatprep.subr.mxu0 0.0
        %911 = vmatpush2.msra.mxu0 0.0
        %912 = vmatprep.subr.mxu0 0.0
        %913 = vmatpush2.msra.mxu0 0.0
        %914 = vmatprep.subr.mxu0 0.0
        %915 = vmatpush2.msra.mxu0 0.0
        %916 = vmatprep.mubr.f32.mxu0 0.0
        %917 = vmatmul.mubr.f32.gmra.mxu0 %v244
        %v918 = vpop.f32.mrf.mxu0
        %v919 = vadd.f32 %v704, %v918
        %v920 = vpop.f32.mrf.mxu0
        %v921 = vadd.f32 %v706, %v920
        %922 = vmatprep.mubr.f32.mxu0 0.0
        %923 = vmatmul.mubr.f32.gmra.mxu0 %v247
        %v924 = vpop.f32.mrf.mxu0
        %v925 = vadd.f32 %v710, %v924
        %v926 = vpop.f32.mrf.mxu0
        %v927 = vadd.f32 %v712, %v926
        %928 = vmatprep.mubr.f32.mxu0 0.0
        %929 = vmatmul.mubr.f32.gmra.mxu0 %v250
        %v930 = vpop.f32.mrf.mxu0
        %v931 = vadd.f32 %v716, %v930
        %v932 = vpop.f32.mrf.mxu0
        %v933 = vadd.f32 %v718, %v932
        %934 = vmatprep.mubr.f32.mxu0 0.0
        %935 = vmatmul.mubr.f32.gmra.mxu0 %v253
        %v936 = vpop.f32.mrf.mxu0
        %v937 = vadd.f32 %v722, %v936
        %v938 = vpop.f32.mrf.mxu0
        %v939 = vadd.f32 %v724, %v938
        %940 = vmatprep.mubr.f32.mxu0 0.0
        %941 = vmatmul.mubr.f32.gmra.mxu0 %v256
        %v942 = vpop.f32.mrf.mxu0
        %v943 = vadd.f32 %v728, %v942
        %v944 = vpop.f32.mrf.mxu0
        %v945 = vadd.f32 %v730, %v944
        %946 = vmatprep.mubr.f32.mxu0 0.0
        %947 = vmatmul.mubr.f32.gmra.mxu0 %v259
        %v948 = vpop.f32.mrf.mxu0
        %v949 = vadd.f32 %v734, %v948
        %v950 = vpop.f32.mrf.mxu0
        %v951 = vadd.f32 %v736, %v950
        %952 = vmatprep.mubr.f32.mxu0 0.0
        %953 = vmatmul.mubr.f32.gmra.mxu0 %v262
        %v954 = vpop.f32.mrf.mxu0
        %v955 = vadd.f32 %v740, %v954
        %v956 = vpop.f32.mrf.mxu0
        %v957 = vadd.f32 %v742, %v956
        %958 = vmatprep.mubr.f32.mxu0 0.0
        %959 = vmatmul.mubr.f32.gmra.mxu0 %v265
        %v960 = vpop.f32.mrf.mxu0
        %v961 = vadd.f32 %v746, %v960
        %v962 = vpop.f32.mrf.mxu0
        %v963 = vadd.f32 %v748, %v962
        %964 = vmatprep.mubr.f32.mxu0 0.0
        %965 = vmatmul.mubr.f32.gmra.mxu0 %v268
        %v966 = vpop.f32.mrf.mxu0
        %v967 = vadd.f32 %v752, %v966
        %v968 = vpop.f32.mrf.mxu0
        %v969 = vadd.f32 %v754, %v968
        %970 = vmatprep.mubr.f32.mxu0 0.0
        %971 = vmatmul.mubr.f32.gmra.mxu0 %v271
        %v972 = vpop.f32.mrf.mxu0
        %v973 = vadd.f32 %v758, %v972
        %v974 = vpop.f32.mrf.mxu0
        %v975 = vadd.f32 %v760, %v974
        %976 = vmatprep.mubr.f32.mxu0 0.0
        %977 = vmatmul.mubr.f32.gmra.mxu0 %v274
        %v978 = vpop.f32.mrf.mxu0
        %v979 = vadd.f32 %v764, %v978
        %v980 = vpop.f32.mrf.mxu0
        %v981 = vadd.f32 %v766, %v980
        %982 = vmatprep.mubr.f32.mxu0 0.0
        %983 = vmatmul.mubr.f32.gmra.mxu0 %v277
        %v984 = vpop.f32.mrf.mxu0
        %v985 = vadd.f32 %v770, %v984
        %v986 = vpop.f32.mrf.mxu0
        %v987 = vadd.f32 %v772, %v986
        %988 = vmatprep.mubr.f32.mxu0 0.0
        %989 = vmatmul.mubr.f32.gmra.mxu0 %v280
        %v990 = vpop.f32.mrf.mxu0
        %v991 = vadd.f32 %v776, %v990
        %v992 = vpop.f32.mrf.mxu0
        %v993 = vadd.f32 %v778, %v992
        %994 = vmatprep.mubr.f32.mxu0 0.0
        %995 = vmatmul.mubr.f32.gmra.mxu0 %v283
        %v996 = vpop.f32.mrf.mxu0
        %v997 = vadd.f32 %v782, %v996
        %v998 = vpop.f32.mrf.mxu0
        %v999 = vadd.f32 %v784, %v998
        %1000 = vmatprep.mubr.f32.mxu0 0.0
        %1001 = vmatmul.mubr.f32.gmra.mxu0 %v286
        %v1002 = vpop.f32.mrf.mxu0
        %v1003 = vadd.f32 %v788, %v1002
        %v1004 = vpop.f32.mrf.mxu0
        %v1005 = vadd.f32 %v790, %v1004
        %1006 = vmatprep.mubr.f32.mxu0 0.0
        %1007 = vmatmul.mubr.f32.gmra.mxu0 %v289
        %v1008 = vpop.f32.mrf.mxu0
        %v1009 = vadd.f32 %v794, %v1008
        %v1010 = vpop.f32.mrf.mxu0
        %v1011 = vadd.f32 %v796, %v1010
        %1012 = vmatprep.mubr.f32.mxu0 0.0
        %1013 = vmatmul.mubr.f32.gmra.mxu0 %v292
        %v1014 = vpop.f32.mrf.mxu0
        %v1015 = vadd.f32 %v800, %v1014
        %v1016 = vpop.f32.mrf.mxu0
        %v1017 = vadd.f32 %v802, %v1016
        %1018 = vmatprep.mubr.f32.mxu0 0.0
        %1019 = vmatmul.mubr.f32.gmra.mxu0 %v295
        %v1020 = vpop.f32.mrf.mxu0
        %v1021 = vadd.f32 %v806, %v1020
        %v1022 = vpop.f32.mrf.mxu0
        %v1023 = vadd.f32 %v808, %v1022
        %1024 = vmatprep.mubr.f32.mxu0 0.0
        %1025 = vmatmul.mubr.f32.gmra.mxu0 %v298
        %v1026 = vpop.f32.mrf.mxu0
        %v1027 = vadd.f32 %v812, %v1026
        %v1028 = vpop.f32.mrf.mxu0
        %v1029 = vadd.f32 %v814, %v1028
        %1030 = vmatprep.mubr.f32.mxu0 0.0
        %1031 = vmatmul.mubr.f32.gmra.mxu0 %v301
        %v1032 = vpop.f32.mrf.mxu0
        %v1033 = vadd.f32 %v818, %v1032
        %v1034 = vpop.f32.mrf.mxu0
        %v1035 = vadd.f32 %v820, %v1034
        %1036 = vmatprep.mubr.f32.mxu0 0.0
        %1037 = vmatmul.mubr.f32.gmra.mxu0 %v304
        %v1038 = vpop.f32.mrf.mxu0
        %v1039 = vadd.f32 %v824, %v1038
        %v1040 = vpop.f32.mrf.mxu0
        %v1041 = vadd.f32 %v826, %v1040
        %1042 = vmatprep.mubr.f32.mxu0 0.0
        %1043 = vmatmul.mubr.f32.gmra.mxu0 %v307
        %v1044 = vpop.f32.mrf.mxu0
        %v1045 = vadd.f32 %v830, %v1044
        %v1046 = vpop.f32.mrf.mxu0
        %v1047 = vadd.f32 %v832, %v1046
        %1048 = vmatprep.mubr.f32.mxu0 0.0
        %1049 = vmatmul.mubr.f32.gmra.mxu0 %v310
        %v1050 = vpop.f32.mrf.mxu0
        %v1051 = vadd.f32 %v836, %v1050
        %v1052 = vpop.f32.mrf.mxu0
        %v1053 = vadd.f32 %v838, %v1052
        %1054 = vmatprep.mubr.f32.mxu0 0.0
        %1055 = vmatmul.mubr.f32.gmra.mxu0 %v313
        %v1056 = vpop.f32.mrf.mxu0
        %v1057 = vadd.f32 %v842, %v1056
        %v1058 = vpop.f32.mrf.mxu0
        %v1059 = vadd.f32 %v844, %v1058
        %1060 = vmatprep.mubr.f32.mxu0 0.0
        %1061 = vmatmul.mubr.f32.gmra.mxu0 %v316
        %v1062 = vpop.f32.mrf.mxu0
        %v1063 = vadd.f32 %v848, %v1062
        %v1064 = vpop.f32.mrf.mxu0
        %v1065 = vadd.f32 %v850, %v1064
        %1066 = vdwg.mxu0
        %1067 = vmatprep.subr.mxu0 %v410
        %1068 = vmatpush1.msra.mxu0 %v409
        %1069 = vmatprep.subr.mxu0 %v404
        %1070 = vmatpush1.msra.mxu0 %v403
        %1071 = vmatprep.subr.mxu0 %v398
        %1072 = vmatpush1.msra.mxu0 %v397
        %1073 = vmatprep.subr.mxu0 %v392
        %1074 = vmatpush1.msra.mxu0 %v391
        %1075 = vmatprep.subr.mxu0 %v386
        %1076 = vmatpush1.msra.mxu0 %v385
        %1077 = vmatprep.subr.mxu0 %v380
        %1078 = vmatpush1.msra.mxu0 %v379
        %1079 = vmatprep.subr.mxu0 %v374
        %1080 = vmatpush1.msra.mxu0 %v373
        %1081 = vmatprep.subr.mxu0 %v368
        %1082 = vmatpush1.msra.mxu0 %v367
        %1083 = vmatprep.subr.mxu0 %v362
        %1084 = vmatpush1.msra.mxu0 %v361
        %1085 = vmatprep.subr.mxu0 %v356
        %1086 = vmatpush1.msra.mxu0 %v355
        %1087 = vmatprep.subr.mxu0 %v350
        %1088 = vmatpush1.msra.mxu0 %v349
        %1089 = vmatprep.subr.mxu0 %v344
        %1090 = vmatpush1.msra.mxu0 %v343
        %1091 = vmatprep.subr.mxu0 %v338
        %1092 = vmatpush1.msra.mxu0 %v337
        %1093 = vmatprep.subr.mxu0 %v332
        %1094 = vmatpush1.msra.mxu0 %v331
        %1095 = vmatprep.subr.mxu0 %v326
        %1096 = vmatpush1.msra.mxu0 %v325
        %1097 = vmatprep.subr.mxu0 %v320
        %1098 = vmatpush1.msra.mxu0 %v319
        %1099 = vmatprep.subr.mxu0 %v506
        %1100 = vmatpush2.msra.mxu0 %v505
        %1101 = vmatprep.subr.mxu0 %v500
        %1102 = vmatpush2.msra.mxu0 %v499
        %1103 = vmatprep.subr.mxu0 %v494
        %1104 = vmatpush2.msra.mxu0 %v493
        %1105 = vmatprep.subr.mxu0 %v488
        %1106 = vmatpush2.msra.mxu0 %v487
        %1107 = vmatprep.subr.mxu0 %v482
        %1108 = vmatpush2.msra.mxu0 %v481
        %1109 = vmatprep.subr.mxu0 %v476
        %1110 = vmatpush2.msra.mxu0 %v475
        %1111 = vmatprep.subr.mxu0 %v470
        %1112 = vmatpush2.msra.mxu0 %v469
        %1113 = vmatprep.subr.mxu0 %v464
        %1114 = vmatpush2.msra.mxu0 %v463
        %1115 = vmatprep.subr.mxu0 %v458
        %1116 = vmatpush2.msra.mxu0 %v457
        %1117 = vmatprep.subr.mxu0 %v452
        %1118 = vmatpush2.msra.mxu0 %v451
        %1119 = vmatprep.subr.mxu0 %v446
        %1120 = vmatpush2.msra.mxu0 %v445
        %1121 = vmatprep.subr.mxu0 %v440
        %1122 = vmatpush2.msra.mxu0 %v439
        %1123 = vmatprep.subr.mxu0 %v434
        %1124 = vmatpush2.msra.mxu0 %v433
        %1125 = vmatprep.subr.mxu0 %v428
        %1126 = vmatpush2.msra.mxu0 %v427
        %1127 = vmatprep.subr.mxu0 %v422
        %1128 = vmatpush2.msra.mxu0 %v421
        %1129 = vmatprep.subr.mxu0 %v416
        %1130 = vmatpush2.msra.mxu0 %v415
        %1131 = vmatprep.mubr.f32.mxu0 %v243
        %1132 = vmatmul.mubr.f32.gmra.mxu0 %v242
        %v1133 = vpop.f32.mrf.mxu0
        %v1134 = vadd.f32 %v618, %v1133
        %v1135 = vpop.f32.mrf.mxu0
        %v1136 = vadd.f32 %v622, %v1135
        %1137 = vmatprep.mubr.f32.mxu0 %v246
        %1138 = vmatmul.mubr.f32.gmra.mxu0 %v245
        %v1139 = vpop.f32.mrf.mxu0
        %v1140 = vadd.f32 %v618, %v1139
        %v1141 = vpop.f32.mrf.mxu0
        %v1142 = vadd.f32 %v622, %v1141
        %1143 = vmatprep.mubr.f32.mxu0 %v249
        %1144 = vmatmul.mubr.f32.gmra.mxu0 %v248
        %v1145 = vpop.f32.mrf.mxu0
        %v1146 = vadd.f32 %v618, %v1145
        %v1147 = vpop.f32.mrf.mxu0
        %v1148 = vadd.f32 %v622, %v1147
        %1149 = vmatprep.mubr.f32.mxu0 %v252
        %1150 = vmatmul.mubr.f32.gmra.mxu0 %v251
        %v1151 = vpop.f32.mrf.mxu0
        %v1152 = vadd.f32 %v618, %v1151
        %v1153 = vpop.f32.mrf.mxu0
        %v1154 = vadd.f32 %v622, %v1153
        %1155 = vmatprep.mubr.f32.mxu0 %v255
        %1156 = vmatmul.mubr.f32.gmra.mxu0 %v254
        %v1157 = vpop.f32.mrf.mxu0
        %v1158 = vadd.f32 %v618, %v1157
        %v1159 = vpop.f32.mrf.mxu0
        %v1160 = vadd.f32 %v622, %v1159
        %1161 = vmatprep.mubr.f32.mxu0 %v258
        %1162 = vmatmul.mubr.f32.gmra.mxu0 %v257
        %v1163 = vpop.f32.mrf.mxu0
        %v1164 = vadd.f32 %v618, %v1163
        %v1165 = vpop.f32.mrf.mxu0
        %v1166 = vadd.f32 %v622, %v1165
        %1167 = vmatprep.mubr.f32.mxu0 %v261
        %1168 = vmatmul.mubr.f32.gmra.mxu0 %v260
        %v1169 = vpop.f32.mrf.mxu0
        %v1170 = vadd.f32 %v618, %v1169
        %v1171 = vpop.f32.mrf.mxu0
        %v1172 = vadd.f32 %v622, %v1171
        %1173 = vmatprep.mubr.f32.mxu0 %v264
        %1174 = vmatmul.mubr.f32.gmra.mxu0 %v263
        %v1175 = vpop.f32.mrf.mxu0
        %v1176 = vadd.f32 %v618, %v1175
        %v1177 = vpop.f32.mrf.mxu0
        %v1178 = vadd.f32 %v622, %v1177
        %1179 = vmatprep.mubr.f32.mxu0 %v267
        %1180 = vmatmul.mubr.f32.gmra.mxu0 %v266
        %v1181 = vpop.f32.mrf.mxu0
        %v1182 = vadd.f32 %v618, %v1181
        %v1183 = vpop.f32.mrf.mxu0
        %v1184 = vadd.f32 %v622, %v1183
        %1185 = vmatprep.mubr.f32.mxu0 %v270
        %1186 = vmatmul.mubr.f32.gmra.mxu0 %v269
        %v1187 = vpop.f32.mrf.mxu0
        %v1188 = vadd.f32 %v618, %v1187
        %v1189 = vpop.f32.mrf.mxu0
        %v1190 = vadd.f32 %v622, %v1189
        %1191 = vmatprep.mubr.f32.mxu0 %v273
        %1192 = vmatmul.mubr.f32.gmra.mxu0 %v272
        %v1193 = vpop.f32.mrf.mxu0
        %v1194 = vadd.f32 %v618, %v1193
        %v1195 = vpop.f32.mrf.mxu0
        %v1196 = vadd.f32 %v622, %v1195
        %1197 = vmatprep.mubr.f32.mxu0 %v276
        %1198 = vmatmul.mubr.f32.gmra.mxu0 %v275
        %v1199 = vpop.f32.mrf.mxu0
        %v1200 = vadd.f32 %v618, %v1199
        %v1201 = vpop.f32.mrf.mxu0
        %v1202 = vadd.f32 %v622, %v1201
        %1203 = vmatprep.mubr.f32.mxu0 %v279
        %1204 = vmatmul.mubr.f32.gmra.mxu0 %v278
        %v1205 = vpop.f32.mrf.mxu0
        %v1206 = vadd.f32 %v618, %v1205
        %v1207 = vpop.f32.mrf.mxu0
        %v1208 = vadd.f32 %v622, %v1207
        %1209 = vmatprep.mubr.f32.mxu0 %v282
        %1210 = vmatmul.mubr.f32.gmra.mxu0 %v281
        %v1211 = vpop.f32.mrf.mxu0
        %v1212 = vadd.f32 %v618, %v1211
        %v1213 = vpop.f32.mrf.mxu0
        %v1214 = vadd.f32 %v622, %v1213
        %1215 = vmatprep.mubr.f32.mxu0 %v285
        %1216 = vmatmul.mubr.f32.gmra.mxu0 %v284
        %v1217 = vpop.f32.mrf.mxu0
        %v1218 = vadd.f32 %v618, %v1217
        %v1219 = vpop.f32.mrf.mxu0
        %v1220 = vadd.f32 %v622, %v1219
        %1221 = vmatprep.mubr.f32.mxu0 %v288
        %1222 = vmatmul.mubr.f32.gmra.mxu0 %v287
        %v1223 = vpop.f32.mrf.mxu0
        %v1224 = vadd.f32 %v618, %v1223
        %v1225 = vpop.f32.mrf.mxu0
        %v1226 = vadd.f32 %v622, %v1225
        %1227 = vmatprep.mubr.f32.mxu0 %v291
        %1228 = vmatmul.mubr.f32.gmra.mxu0 %v290
        %v1229 = vpop.f32.mrf.mxu0
        %v1230 = vadd.f32 %v618, %v1229
        %v1231 = vpop.f32.mrf.mxu0
        %v1232 = vadd.f32 %v622, %v1231
        %1233 = vmatprep.mubr.f32.mxu0 %v294
        %1234 = vmatmul.mubr.f32.gmra.mxu0 %v293
        %v1235 = vpop.f32.mrf.mxu0
        %v1236 = vadd.f32 %v618, %v1235
        %v1237 = vpop.f32.mrf.mxu0
        %v1238 = vadd.f32 %v622, %v1237
        %1239 = vmatprep.mubr.f32.mxu0 %v297
        %1240 = vmatmul.mubr.f32.gmra.mxu0 %v296
        %v1241 = vpop.f32.mrf.mxu0
        %v1242 = vadd.f32 %v618, %v1241
        %v1243 = vpop.f32.mrf.mxu0
        %v1244 = vadd.f32 %v622, %v1243
        %1245 = vmatprep.mubr.f32.mxu0 %v300
        %1246 = vmatmul.mubr.f32.gmra.mxu0 %v299
        %v1247 = vpop.f32.mrf.mxu0
        %v1248 = vadd.f32 %v618, %v1247
        %v1249 = vpop.f32.mrf.mxu0
        %v1250 = vadd.f32 %v622, %v1249
        %1251 = vmatprep.mubr.f32.mxu0 %v303
        %1252 = vmatmul.mubr.f32.gmra.mxu0 %v302
        %v1253 = vpop.f32.mrf.mxu0
        %v1254 = vadd.f32 %v618, %v1253
        %v1255 = vpop.f32.mrf.mxu0
        %v1256 = vadd.f32 %v622, %v1255
        %1257 = vmatprep.mubr.f32.mxu0 %v306
        %1258 = vmatmul.mubr.f32.gmra.mxu0 %v305
        %v1259 = vpop.f32.mrf.mxu0
        %v1260 = vadd.f32 %v618, %v1259
        %v1261 = vpop.f32.mrf.mxu0
        %v1262 = vadd.f32 %v622, %v1261
        %1263 = vmatprep.mubr.f32.mxu0 %v309
        %1264 = vmatmul.mubr.f32.gmra.mxu0 %v308
        %v1265 = vpop.f32.mrf.mxu0
        %v1266 = vadd.f32 %v618, %v1265
        %v1267 = vpop.f32.mrf.mxu0
        %v1268 = vadd.f32 %v622, %v1267
        %1269 = vmatprep.mubr.f32.mxu0 %v312
        %1270 = vmatmul.mubr.f32.gmra.mxu0 %v311
        %v1271 = vpop.f32.mrf.mxu0
        %v1272 = vadd.f32 %v618, %v1271
        %v1273 = vpop.f32.mrf.mxu0
        %v1274 = vadd.f32 %v622, %v1273
        %1275 = vmatprep.mubr.f32.mxu0 %v315
        %1276 = vmatmul.mubr.f32.gmra.mxu0 %v314
        %v1277 = vpop.f32.mrf.mxu0
        %v1278 = vadd.f32 %v618, %v1277
        %v1279 = vpop.f32.mrf.mxu0
        %v1280 = vadd.f32 %v622, %v1279
        %1281 = vdwg.mxu0
        %1282 = vmatprep.subr.mxu0 %v602
        %1283 = vmatpush1.msra.mxu0 %v601
        %1284 = vmatprep.subr.mxu0 %v596
        %1285 = vmatpush1.msra.mxu0 %v595
        %1286 = vmatprep.subr.mxu0 %v590
        %1287 = vmatpush1.msra.mxu0 %v589
        %1288 = vmatprep.subr.mxu0 %v584
        %1289 = vmatpush1.msra.mxu0 %v583
        %1290 = vmatprep.subr.mxu0 %v578
        %1291 = vmatpush1.msra.mxu0 %v577
        %1292 = vmatprep.subr.mxu0 %v572
        %1293 = vmatpush1.msra.mxu0 %v571
        %1294 = vmatprep.subr.mxu0 %v566
        %1295 = vmatpush1.msra.mxu0 %v565
        %1296 = vmatprep.subr.mxu0 %v560
        %1297 = vmatpush1.msra.mxu0 %v559
        %1298 = vmatprep.subr.mxu0 %v554
        %1299 = vmatpush1.msra.mxu0 %v553
        %1300 = vmatprep.subr.mxu0 %v548
        %1301 = vmatpush1.msra.mxu0 %v547
        %1302 = vmatprep.subr.mxu0 %v542
        %1303 = vmatpush1.msra.mxu0 %v541
        %1304 = vmatprep.subr.mxu0 %v536
        %1305 = vmatpush1.msra.mxu0 %v535
        %1306 = vmatprep.subr.mxu0 %v530
        %1307 = vmatpush1.msra.mxu0 %v529
        %1308 = vmatprep.subr.mxu0 %v524
        %1309 = vmatpush1.msra.mxu0 %v523
        %1310 = vmatprep.subr.mxu0 %v518
        %1311 = vmatpush1.msra.mxu0 %v517
        %1312 = vmatprep.subr.mxu0 %v512
        %1313 = vmatpush1.msra.mxu0 %v511
        %1314 = vmatprep.subr.mxu0 0.0
        %1315 = vmatpush2.msra.mxu0 0.0
        %1316 = vmatprep.subr.mxu0 0.0
        %1317 = vmatpush2.msra.mxu0 0.0
        %1318 = vmatprep.subr.mxu0 0.0
        %1319 = vmatpush2.msra.mxu0 0.0
        %1320 = vmatprep.subr.mxu0 0.0
        %1321 = vmatpush2.msra.mxu0 0.0
        %1322 = vmatprep.subr.mxu0 0.0
        %1323 = vmatpush2.msra.mxu0 0.0
        %1324 = vmatprep.subr.mxu0 0.0
        %1325 = vmatpush2.msra.mxu0 0.0
        %1326 = vmatprep.subr.mxu0 0.0
        %1327 = vmatpush2.msra.mxu0 0.0
        %1328 = vmatprep.subr.mxu0 0.0
        %1329 = vmatpush2.msra.mxu0 0.0
        %1330 = vmatprep.subr.mxu0 0.0
        %1331 = vmatpush2.msra.mxu0 0.0
        %1332 = vmatprep.subr.mxu0 0.0
        %1333 = vmatpush2.msra.mxu0 0.0
        %1334 = vmatprep.subr.mxu0 0.0
        %1335 = vmatpush2.msra.mxu0 0.0
        %1336 = vmatprep.subr.mxu0 0.0
        %1337 = vmatpush2.msra.mxu0 0.0
        %1338 = vmatprep.subr.mxu0 0.0
        %1339 = vmatpush2.msra.mxu0 0.0
        %1340 = vmatprep.subr.mxu0 0.0
        %1341 = vmatpush2.msra.mxu0 0.0
        %1342 = vmatprep.subr.mxu0 0.0
        %1343 = vmatpush2.msra.mxu0 0.0
        %1344 = vmatprep.subr.mxu0 0.0
        %1345 = vmatpush2.msra.mxu0 0.0
        %1346 = vmatprep.mubr.f32.mxu0 0.0
        %1347 = vmatmul.mubr.f32.gmra.mxu0 %v244
        %v1348 = vpop.f32.mrf.mxu0
        %v1349 = vadd.f32 %v1134, %v1348
        %v1350 = vpop.f32.mrf.mxu0
        %v1351 = vadd.f32 %v1136, %v1350
        %1352 = vmatprep.mubr.f32.mxu0 0.0
        %1353 = vmatmul.mubr.f32.gmra.mxu0 %v247
        %v1354 = vpop.f32.mrf.mxu0
        %v1355 = vadd.f32 %v1140, %v1354
        %v1356 = vpop.f32.mrf.mxu0
        %v1357 = vadd.f32 %v1142, %v1356
        %1358 = vmatprep.mubr.f32.mxu0 0.0
        %1359 = vmatmul.mubr.f32.gmra.mxu0 %v250
        %v1360 = vpop.f32.mrf.mxu0
        %v1361 = vadd.f32 %v1146, %v1360
        %v1362 = vpop.f32.mrf.mxu0
        %v1363 = vadd.f32 %v1148, %v1362
        %1364 = vmatprep.mubr.f32.mxu0 0.0
        %1365 = vmatmul.mubr.f32.gmra.mxu0 %v253
        %v1366 = vpop.f32.mrf.mxu0
        %v1367 = vadd.f32 %v1152, %v1366
        %v1368 = vpop.f32.mrf.mxu0
        %v1369 = vadd.f32 %v1154, %v1368
        %1370 = vmatprep.mubr.f32.mxu0 0.0
        %1371 = vmatmul.mubr.f32.gmra.mxu0 %v256
        %v1372 = vpop.f32.mrf.mxu0
        %v1373 = vadd.f32 %v1158, %v1372
        %v1374 = vpop.f32.mrf.mxu0
        %v1375 = vadd.f32 %v1160, %v1374
        %1376 = vmatprep.mubr.f32.mxu0 0.0
        %1377 = vmatmul.mubr.f32.gmra.mxu0 %v259
        %v1378 = vpop.f32.mrf.mxu0
        %v1379 = vadd.f32 %v1164, %v1378
        %v1380 = vpop.f32.mrf.mxu0
        %v1381 = vadd.f32 %v1166, %v1380
        %1382 = vmatprep.mubr.f32.mxu0 0.0
        %1383 = vmatmul.mubr.f32.gmra.mxu0 %v262
        %v1384 = vpop.f32.mrf.mxu0
        %v1385 = vadd.f32 %v1170, %v1384
        %v1386 = vpop.f32.mrf.mxu0
        %v1387 = vadd.f32 %v1172, %v1386
        %1388 = vmatprep.mubr.f32.mxu0 0.0
        %1389 = vmatmul.mubr.f32.gmra.mxu0 %v265
        %v1390 = vpop.f32.mrf.mxu0
        %v1391 = vadd.f32 %v1176, %v1390
        %v1392 = vpop.f32.mrf.mxu0
        %v1393 = vadd.f32 %v1178, %v1392
        %1394 = vmatprep.mubr.f32.mxu0 0.0
        %1395 = vmatmul.mubr.f32.gmra.mxu0 %v268
        %v1396 = vpop.f32.mrf.mxu0
        %v1397 = vadd.f32 %v1182, %v1396
        %v1398 = vpop.f32.mrf.mxu0
        %v1399 = vadd.f32 %v1184, %v1398
        %1400 = vmatprep.mubr.f32.mxu0 0.0
        %1401 = vmatmul.mubr.f32.gmra.mxu0 %v271
        %v1402 = vpop.f32.mrf.mxu0
        %v1403 = vadd.f32 %v1188, %v1402
        %v1404 = vpop.f32.mrf.mxu0
        %v1405 = vadd.f32 %v1190, %v1404
        %1406 = vmatprep.mubr.f32.mxu0 0.0
        %1407 = vmatmul.mubr.f32.gmra.mxu0 %v274
        %v1408 = vpop.f32.mrf.mxu0
        %v1409 = vadd.f32 %v1194, %v1408
        %v1410 = vpop.f32.mrf.mxu0
        %v1411 = vadd.f32 %v1196, %v1410
        %1412 = vmatprep.mubr.f32.mxu0 0.0
        %1413 = vmatmul.mubr.f32.gmra.mxu0 %v277
        %v1414 = vpop.f32.mrf.mxu0
        %v1415 = vadd.f32 %v1200, %v1414
        %v1416 = vpop.f32.mrf.mxu0
        %v1417 = vadd.f32 %v1202, %v1416
        %1418 = vmatprep.mubr.f32.mxu0 0.0
        %1419 = vmatmul.mubr.f32.gmra.mxu0 %v280
        %v1420 = vpop.f32.mrf.mxu0
        %v1421 = vadd.f32 %v1206, %v1420
        %v1422 = vpop.f32.mrf.mxu0
        %v1423 = vadd.f32 %v1208, %v1422
        %1424 = vmatprep.mubr.f32.mxu0 0.0
        %1425 = vmatmul.mubr.f32.gmra.mxu0 %v283
        %v1426 = vpop.f32.mrf.mxu0
        %v1427 = vadd.f32 %v1212, %v1426
        %v1428 = vpop.f32.mrf.mxu0
        %v1429 = vadd.f32 %v1214, %v1428
        %1430 = vmatprep.mubr.f32.mxu0 0.0
        %1431 = vmatmul.mubr.f32.gmra.mxu0 %v286
        %v1432 = vpop.f32.mrf.mxu0
        %v1433 = vadd.f32 %v1218, %v1432
        %v1434 = vpop.f32.mrf.mxu0
        %v1435 = vadd.f32 %v1220, %v1434
        %1436 = vmatprep.mubr.f32.mxu0 0.0
        %1437 = vmatmul.mubr.f32.gmra.mxu0 %v289
        %v1438 = vpop.f32.mrf.mxu0
        %v1439 = vadd.f32 %v1224, %v1438
        %v1440 = vpop.f32.mrf.mxu0
        %v1441 = vadd.f32 %v1226, %v1440
        %1442 = vmatprep.mubr.f32.mxu0 0.0
        %1443 = vmatmul.mubr.f32.gmra.mxu0 %v292
        %v1444 = vpop.f32.mrf.mxu0
        %v1445 = vadd.f32 %v1230, %v1444
        %v1446 = vpop.f32.mrf.mxu0
        %v1447 = vadd.f32 %v1232, %v1446
        %1448 = vmatprep.mubr.f32.mxu0 0.0
        %1449 = vmatmul.mubr.f32.gmra.mxu0 %v295
        %v1450 = vpop.f32.mrf.mxu0
        %v1451 = vadd.f32 %v1236, %v1450
        %v1452 = vpop.f32.mrf.mxu0
        %v1453 = vadd.f32 %v1238, %v1452
        %1454 = vmatprep.mubr.f32.mxu0 0.0
        %1455 = vmatmul.mubr.f32.gmra.mxu0 %v298
        %v1456 = vpop.f32.mrf.mxu0
        %v1457 = vadd.f32 %v1242, %v1456
        %v1458 = vpop.f32.mrf.mxu0
        %v1459 = vadd.f32 %v1244, %v1458
        %1460 = vmatprep.mubr.f32.mxu0 0.0
        %1461 = vmatmul.mubr.f32.gmra.mxu0 %v301
        %v1462 = vpop.f32.mrf.mxu0
        %v1463 = vadd.f32 %v1248, %v1462
        %v1464 = vpop.f32.mrf.mxu0
        %v1465 = vadd.f32 %v1250, %v1464
        %1466 = vmatprep.mubr.f32.mxu0 0.0
        %1467 = vmatmul.mubr.f32.gmra.mxu0 %v304
        %v1468 = vpop.f32.mrf.mxu0
        %v1469 = vadd.f32 %v1254, %v1468
        %v1470 = vpop.f32.mrf.mxu0
        %v1471 = vadd.f32 %v1256, %v1470
        %1472 = vmatprep.mubr.f32.mxu0 0.0
        %1473 = vmatmul.mubr.f32.gmra.mxu0 %v307
        %v1474 = vpop.f32.mrf.mxu0
        %v1475 = vadd.f32 %v1260, %v1474
        %v1476 = vpop.f32.mrf.mxu0
        %v1477 = vadd.f32 %v1262, %v1476
        %1478 = vmatprep.mubr.f32.mxu0 0.0
        %1479 = vmatmul.mubr.f32.gmra.mxu0 %v310
        %v1480 = vpop.f32.mrf.mxu0
        %v1481 = vadd.f32 %v1266, %v1480
        %v1482 = vpop.f32.mrf.mxu0
        %v1483 = vadd.f32 %v1268, %v1482
        %1484 = vmatprep.mubr.f32.mxu0 0.0
        %1485 = vmatmul.mubr.f32.gmra.mxu0 %v313
        %v1486 = vpop.f32.mrf.mxu0
        %v1487 = vadd.f32 %v1272, %v1486
        %v1488 = vpop.f32.mrf.mxu0
        %v1489 = vadd.f32 %v1274, %v1488
        %1490 = vmatprep.mubr.f32.mxu0 0.0
        %1491 = vmatmul.mubr.f32.gmra.mxu0 %v316
        %v1492 = vpop.f32.mrf.mxu0
        %v1493 = vadd.f32 %v1278, %v1492
        %v1494 = vpop.f32.mrf.mxu0
        %v1495 = vadd.f32 %v1280, %v1494
        %1496 = vdwg.mxu0
        %1497 = vmatprep.subr.mxu0 %v412
        %1498 = vmatpush1.msra.mxu0 %v411
        %1499 = vmatprep.subr.mxu0 %v406
        %1500 = vmatpush1.msra.mxu0 %v405
        %1501 = vmatprep.subr.mxu0 %v400
        %1502 = vmatpush1.msra.mxu0 %v399
        %1503 = vmatprep.subr.mxu0 %v394
        %1504 = vmatpush1.msra.mxu0 %v393
        %1505 = vmatprep.subr.mxu0 %v388
        %1506 = vmatpush1.msra.mxu0 %v387
        %1507 = vmatprep.subr.mxu0 %v382
        %1508 = vmatpush1.msra.mxu0 %v381
        %1509 = vmatprep.subr.mxu0 %v376
        %1510 = vmatpush1.msra.mxu0 %v375
        %1511 = vmatprep.subr.mxu0 %v370
        %1512 = vmatpush1.msra.mxu0 %v369
        %1513 = vmatprep.subr.mxu0 %v364
        %1514 = vmatpush1.msra.mxu0 %v363
        %1515 = vmatprep.subr.mxu0 %v358
        %1516 = vmatpush1.msra.mxu0 %v357
        %1517 = vmatprep.subr.mxu0 %v352
        %1518 = vmatpush1.msra.mxu0 %v351
        %1519 = vmatprep.subr.mxu0 %v346
        %1520 = vmatpush1.msra.mxu0 %v345
        %1521 = vmatprep.subr.mxu0 %v340
        %1522 = vmatpush1.msra.mxu0 %v339
        %1523 = vmatprep.subr.mxu0 %v334
        %1524 = vmatpush1.msra.mxu0 %v333
        %1525 = vmatprep.subr.mxu0 %v328
        %1526 = vmatpush1.msra.mxu0 %v327
        %1527 = vmatprep.subr.mxu0 %v322
        %1528 = vmatpush1.msra.mxu0 %v321
        %1529 = vmatprep.subr.mxu0 %v508
        %1530 = vmatpush2.msra.mxu0 %v507
        %1531 = vmatprep.subr.mxu0 %v502
        %1532 = vmatpush2.msra.mxu0 %v501
        %1533 = vmatprep.subr.mxu0 %v496
        %1534 = vmatpush2.msra.mxu0 %v495
        %1535 = vmatprep.subr.mxu0 %v490
        %1536 = vmatpush2.msra.mxu0 %v489
        %1537 = vmatprep.subr.mxu0 %v484
        %1538 = vmatpush2.msra.mxu0 %v483
        %1539 = vmatprep.subr.mxu0 %v478
        %1540 = vmatpush2.msra.mxu0 %v477
        %1541 = vmatprep.subr.mxu0 %v472
        %1542 = vmatpush2.msra.mxu0 %v471
        %1543 = vmatprep.subr.mxu0 %v466
        %1544 = vmatpush2.msra.mxu0 %v465
        %1545 = vmatprep.subr.mxu0 %v460
        %1546 = vmatpush2.msra.mxu0 %v459
        %1547 = vmatprep.subr.mxu0 %v454
        %1548 = vmatpush2.msra.mxu0 %v453
        %1549 = vmatprep.subr.mxu0 %v448
        %1550 = vmatpush2.msra.mxu0 %v447
        %1551 = vmatprep.subr.mxu0 %v442
        %1552 = vmatpush2.msra.mxu0 %v441
        %1553 = vmatprep.subr.mxu0 %v436
        %1554 = vmatpush2.msra.mxu0 %v435
        %1555 = vmatprep.subr.mxu0 %v430
        %1556 = vmatpush2.msra.mxu0 %v429
        %1557 = vmatprep.subr.mxu0 %v424
        %1558 = vmatpush2.msra.mxu0 %v423
        %1559 = vmatprep.subr.mxu0 %v418
        %1560 = vmatpush2.msra.mxu0 %v417
        %1561 = vmatprep.mubr.f32.mxu0 %v243
        %1562 = vmatmul.mubr.f32.gmra.mxu0 %v242
        %v1563 = vpop.f32.mrf.mxu0
        %v1564 = vadd.f32 %v626, %v1563
        %v1565 = vpop.f32.mrf.mxu0
        %v1566 = vadd.f32 %v630, %v1565
        %1567 = vmatprep.mubr.f32.mxu0 %v246
        %1568 = vmatmul.mubr.f32.gmra.mxu0 %v245
        %v1569 = vpop.f32.mrf.mxu0
        %v1570 = vadd.f32 %v626, %v1569
        %v1571 = vpop.f32.mrf.mxu0
        %v1572 = vadd.f32 %v630, %v1571
        %1573 = vmatprep.mubr.f32.mxu0 %v249
        %1574 = vmatmul.mubr.f32.gmra.mxu0 %v248
        %v1575 = vpop.f32.mrf.mxu0
        %v1576 = vadd.f32 %v626, %v1575
        %v1577 = vpop.f32.mrf.mxu0
        %v1578 = vadd.f32 %v630, %v1577
        %1579 = vmatprep.mubr.f32.mxu0 %v252
        %1580 = vmatmul.mubr.f32.gmra.mxu0 %v251
        %v1581 = vpop.f32.mrf.mxu0
        %v1582 = vadd.f32 %v626, %v1581
        %v1583 = vpop.f32.mrf.mxu0
        %v1584 = vadd.f32 %v630, %v1583
        %1585 = vmatprep.mubr.f32.mxu0 %v255
        %1586 = vmatmul.mubr.f32.gmra.mxu0 %v254
        %v1587 = vpop.f32.mrf.mxu0
        %v1588 = vadd.f32 %v626, %v1587
        %v1589 = vpop.f32.mrf.mxu0
        %v1590 = vadd.f32 %v630, %v1589
        %1591 = vmatprep.mubr.f32.mxu0 %v258
        %1592 = vmatmul.mubr.f32.gmra.mxu0 %v257
        %v1593 = vpop.f32.mrf.mxu0
        %v1594 = vadd.f32 %v626, %v1593
        %v1595 = vpop.f32.mrf.mxu0
        %v1596 = vadd.f32 %v630, %v1595
        %1597 = vmatprep.mubr.f32.mxu0 %v261
        %1598 = vmatmul.mubr.f32.gmra.mxu0 %v260
        %v1599 = vpop.f32.mrf.mxu0
        %v1600 = vadd.f32 %v626, %v1599
        %v1601 = vpop.f32.mrf.mxu0
        %v1602 = vadd.f32 %v630, %v1601
        %1603 = vmatprep.mubr.f32.mxu0 %v264
        %1604 = vmatmul.mubr.f32.gmra.mxu0 %v263
        %v1605 = vpop.f32.mrf.mxu0
        %v1606 = vadd.f32 %v626, %v1605
        %v1607 = vpop.f32.mrf.mxu0
        %v1608 = vadd.f32 %v630, %v1607
        %1609 = vmatprep.mubr.f32.mxu0 %v267
        %1610 = vmatmul.mubr.f32.gmra.mxu0 %v266
        %v1611 = vpop.f32.mrf.mxu0
        %v1612 = vadd.f32 %v626, %v1611
        %v1613 = vpop.f32.mrf.mxu0
        %v1614 = vadd.f32 %v630, %v1613
        %1615 = vmatprep.mubr.f32.mxu0 %v270
        %1616 = vmatmul.mubr.f32.gmra.mxu0 %v269
        %v1617 = vpop.f32.mrf.mxu0
        %v1618 = vadd.f32 %v626, %v1617
        %v1619 = vpop.f32.mrf.mxu0
        %v1620 = vadd.f32 %v630, %v1619
        %1621 = vmatprep.mubr.f32.mxu0 %v273
        %1622 = vmatmul.mubr.f32.gmra.mxu0 %v272
        %v1623 = vpop.f32.mrf.mxu0
        %v1624 = vadd.f32 %v626, %v1623
        %v1625 = vpop.f32.mrf.mxu0
        %v1626 = vadd.f32 %v630, %v1625
        %1627 = vmatprep.mubr.f32.mxu0 %v276
        %1628 = vmatmul.mubr.f32.gmra.mxu0 %v275
        %v1629 = vpop.f32.mrf.mxu0
        %v1630 = vadd.f32 %v626, %v1629
        %v1631 = vpop.f32.mrf.mxu0
        %v1632 = vadd.f32 %v630, %v1631
        %1633 = vmatprep.mubr.f32.mxu0 %v279
        %1634 = vmatmul.mubr.f32.gmra.mxu0 %v278
        %v1635 = vpop.f32.mrf.mxu0
        %v1636 = vadd.f32 %v626, %v1635
        %v1637 = vpop.f32.mrf.mxu0
        %v1638 = vadd.f32 %v630, %v1637
        %1639 = vmatprep.mubr.f32.mxu0 %v282
        %1640 = vmatmul.mubr.f32.gmra.mxu0 %v281
        %v1641 = vpop.f32.mrf.mxu0
        %v1642 = vadd.f32 %v626, %v1641
        %v1643 = vpop.f32.mrf.mxu0
        %v1644 = vadd.f32 %v630, %v1643
        %1645 = vmatprep.mubr.f32.mxu0 %v285
        %1646 = vmatmul.mubr.f32.gmra.mxu0 %v284
        %v1647 = vpop.f32.mrf.mxu0
        %v1648 = vadd.f32 %v626, %v1647
        %v1649 = vpop.f32.mrf.mxu0
        %v1650 = vadd.f32 %v630, %v1649
        %1651 = vmatprep.mubr.f32.mxu0 %v288
        %1652 = vmatmul.mubr.f32.gmra.mxu0 %v287
        %v1653 = vpop.f32.mrf.mxu0
        %v1654 = vadd.f32 %v626, %v1653
        %v1655 = vpop.f32.mrf.mxu0
        %v1656 = vadd.f32 %v630, %v1655
        %1657 = vmatprep.mubr.f32.mxu0 %v291
        %1658 = vmatmul.mubr.f32.gmra.mxu0 %v290
        %v1659 = vpop.f32.mrf.mxu0
        %v1660 = vadd.f32 %v626, %v1659
        %v1661 = vpop.f32.mrf.mxu0
        %v1662 = vadd.f32 %v630, %v1661
        %1663 = vmatprep.mubr.f32.mxu0 %v294
        %1664 = vmatmul.mubr.f32.gmra.mxu0 %v293
        %v1665 = vpop.f32.mrf.mxu0
        %v1666 = vadd.f32 %v626, %v1665
        %v1667 = vpop.f32.mrf.mxu0
        %v1668 = vadd.f32 %v630, %v1667
        %1669 = vmatprep.mubr.f32.mxu0 %v297
        %1670 = vmatmul.mubr.f32.gmra.mxu0 %v296
        %v1671 = vpop.f32.mrf.mxu0
        %v1672 = vadd.f32 %v626, %v1671
        %v1673 = vpop.f32.mrf.mxu0
        %v1674 = vadd.f32 %v630, %v1673
        %1675 = vmatprep.mubr.f32.mxu0 %v300
        %1676 = vmatmul.mubr.f32.gmra.mxu0 %v299
        %v1677 = vpop.f32.mrf.mxu0
        %v1678 = vadd.f32 %v626, %v1677
        %v1679 = vpop.f32.mrf.mxu0
        %v1680 = vadd.f32 %v630, %v1679
        %1681 = vmatprep.mubr.f32.mxu0 %v303
        %1682 = vmatmul.mubr.f32.gmra.mxu0 %v302
        %v1683 = vpop.f32.mrf.mxu0
        %v1684 = vadd.f32 %v626, %v1683
        %v1685 = vpop.f32.mrf.mxu0
        %v1686 = vadd.f32 %v630, %v1685
        %1687 = vmatprep.mubr.f32.mxu0 %v306
        %1688 = vmatmul.mubr.f32.gmra.mxu0 %v305
        %v1689 = vpop.f32.mrf.mxu0
        %v1690 = vadd.f32 %v626, %v1689
        %v1691 = vpop.f32.mrf.mxu0
        %v1692 = vadd.f32 %v630, %v1691
        %1693 = vmatprep.mubr.f32.mxu0 %v309
        %1694 = vmatmul.mubr.f32.gmra.mxu0 %v308
        %v1695 = vpop.f32.mrf.mxu0
        %v1696 = vadd.f32 %v626, %v1695
        %v1697 = vpop.f32.mrf.mxu0
        %v1698 = vadd.f32 %v630, %v1697
        %1699 = vmatprep.mubr.f32.mxu0 %v312
        %1700 = vmatmul.mubr.f32.gmra.mxu0 %v311
        %v1701 = vpop.f32.mrf.mxu0
        %v1702 = vadd.f32 %v626, %v1701
        %v1703 = vpop.f32.mrf.mxu0
        %v1704 = vadd.f32 %v630, %v1703
        %1705 = vmatprep.mubr.f32.mxu0 %v315
        %1706 = vmatmul.mubr.f32.gmra.mxu0 %v314
        %v1707 = vpop.f32.mrf.mxu0
        %v1708 = vadd.f32 %v626, %v1707
        %v1709 = vpop.f32.mrf.mxu0
        %v1710 = vadd.f32 %v630, %v1709
        %1711 = vdwg.mxu0
        %1712 = vmatprep.subr.mxu0 %v604
        %1713 = vmatpush1.msra.mxu0 %v603
        %1714 = vmatprep.subr.mxu0 %v598
        %1715 = vmatpush1.msra.mxu0 %v597
        %1716 = vmatprep.subr.mxu0 %v592
        %1717 = vmatpush1.msra.mxu0 %v591
        %1718 = vmatprep.subr.mxu0 %v586
        %1719 = vmatpush1.msra.mxu0 %v585
        %1720 = vmatprep.subr.mxu0 %v580
        %1721 = vmatpush1.msra.mxu0 %v579
        %1722 = vmatprep.subr.mxu0 %v574
        %1723 = vmatpush1.msra.mxu0 %v573
        %1724 = vmatprep.subr.mxu0 %v568
        %1725 = vmatpush1.msra.mxu0 %v567
        %1726 = vmatprep.subr.mxu0 %v562
        %1727 = vmatpush1.msra.mxu0 %v561
        %1728 = vmatprep.subr.mxu0 %v556
        %1729 = vmatpush1.msra.mxu0 %v555
        %1730 = vmatprep.subr.mxu0 %v550
        %1731 = vmatpush1.msra.mxu0 %v549
        %1732 = vmatprep.subr.mxu0 %v544
        %1733 = vmatpush1.msra.mxu0 %v543
        %1734 = vmatprep.subr.mxu0 %v538
        %1735 = vmatpush1.msra.mxu0 %v537
        %1736 = vmatprep.subr.mxu0 %v532
        %1737 = vmatpush1.msra.mxu0 %v531
        %1738 = vmatprep.subr.mxu0 %v526
        %1739 = vmatpush1.msra.mxu0 %v525
        %1740 = vmatprep.subr.mxu0 %v520
        %1741 = vmatpush1.msra.mxu0 %v519
        %1742 = vmatprep.subr.mxu0 %v514
        %1743 = vmatpush1.msra.mxu0 %v513
        %1744 = vmatprep.subr.mxu0 0.0
        %1745 = vmatpush2.msra.mxu0 0.0
        %1746 = vmatprep.subr.mxu0 0.0
        %1747 = vmatpush2.msra.mxu0 0.0
        %1748 = vmatprep.subr.mxu0 0.0
        %1749 = vmatpush2.msra.mxu0 0.0
        %1750 = vmatprep.subr.mxu0 0.0
        %1751 = vmatpush2.msra.mxu0 0.0
        %1752 = vmatprep.subr.mxu0 0.0
        %1753 = vmatpush2.msra.mxu0 0.0
        %1754 = vmatprep.subr.mxu0 0.0
        %1755 = vmatpush2.msra.mxu0 0.0
        %1756 = vmatprep.subr.mxu0 0.0
        %1757 = vmatpush2.msra.mxu0 0.0
        %1758 = vmatprep.subr.mxu0 0.0
        %1759 = vmatpush2.msra.mxu0 0.0
        %1760 = vmatprep.subr.mxu0 0.0
        %1761 = vmatpush2.msra.mxu0 0.0
        %1762 = vmatprep.subr.mxu0 0.0
        %1763 = vmatpush2.msra.mxu0 0.0
        %1764 = vmatprep.subr.mxu0 0.0
        %1765 = vmatpush2.msra.mxu0 0.0
        %1766 = vmatprep.subr.mxu0 0.0
        %1767 = vmatpush2.msra.mxu0 0.0
        %1768 = vmatprep.subr.mxu0 0.0
        %1769 = vmatpush2.msra.mxu0 0.0
        %1770 = vmatprep.subr.mxu0 0.0
        %1771 = vmatpush2.msra.mxu0 0.0
        %1772 = vmatprep.subr.mxu0 0.0
        %1773 = vmatpush2.msra.mxu0 0.0
        %1774 = vmatprep.subr.mxu0 0.0
        %1775 = vmatpush2.msra.mxu0 0.0
        %1776 = vmatprep.mubr.f32.mxu0 0.0
        %1777 = vmatmul.mubr.f32.gmra.mxu0 %v244
        %v1778 = vpop.f32.mrf.mxu0
        %v1779 = vadd.f32 %v1564, %v1778
        %v1780 = vpop.f32.mrf.mxu0
        %v1781 = vadd.f32 %v1566, %v1780
        %1782 = vmatprep.mubr.f32.mxu0 0.0
        %1783 = vmatmul.mubr.f32.gmra.mxu0 %v247
        %v1784 = vpop.f32.mrf.mxu0
        %v1785 = vadd.f32 %v1570, %v1784
        %v1786 = vpop.f32.mrf.mxu0
        %v1787 = vadd.f32 %v1572, %v1786
        %1788 = vmatprep.mubr.f32.mxu0 0.0
        %1789 = vmatmul.mubr.f32.gmra.mxu0 %v250
        %v1790 = vpop.f32.mrf.mxu0
        %v1791 = vadd.f32 %v1576, %v1790
        %v1792 = vpop.f32.mrf.mxu0
        %v1793 = vadd.f32 %v1578, %v1792
        %1794 = vmatprep.mubr.f32.mxu0 0.0
        %1795 = vmatmul.mubr.f32.gmra.mxu0 %v253
        %v1796 = vpop.f32.mrf.mxu0
        %v1797 = vadd.f32 %v1582, %v1796
        %v1798 = vpop.f32.mrf.mxu0
        %v1799 = vadd.f32 %v1584, %v1798
        %1800 = vmatprep.mubr.f32.mxu0 0.0
        %1801 = vmatmul.mubr.f32.gmra.mxu0 %v256
        %v1802 = vpop.f32.mrf.mxu0
        %v1803 = vadd.f32 %v1588, %v1802
        %v1804 = vpop.f32.mrf.mxu0
        %v1805 = vadd.f32 %v1590, %v1804
        %1806 = vmatprep.mubr.f32.mxu0 0.0
        %1807 = vmatmul.mubr.f32.gmra.mxu0 %v259
        %v1808 = vpop.f32.mrf.mxu0
        %v1809 = vadd.f32 %v1594, %v1808
        %v1810 = vpop.f32.mrf.mxu0
        %v1811 = vadd.f32 %v1596, %v1810
        %1812 = vmatprep.mubr.f32.mxu0 0.0
        %1813 = vmatmul.mubr.f32.gmra.mxu0 %v262
        %v1814 = vpop.f32.mrf.mxu0
        %v1815 = vadd.f32 %v1600, %v1814
        %v1816 = vpop.f32.mrf.mxu0
        %v1817 = vadd.f32 %v1602, %v1816
        %1818 = vmatprep.mubr.f32.mxu0 0.0
        %1819 = vmatmul.mubr.f32.gmra.mxu0 %v265
        %v1820 = vpop.f32.mrf.mxu0
        %v1821 = vadd.f32 %v1606, %v1820
        %v1822 = vpop.f32.mrf.mxu0
        %v1823 = vadd.f32 %v1608, %v1822
        %1824 = vmatprep.mubr.f32.mxu0 0.0
        %1825 = vmatmul.mubr.f32.gmra.mxu0 %v268
        %v1826 = vpop.f32.mrf.mxu0
        %v1827 = vadd.f32 %v1612, %v1826
        %v1828 = vpop.f32.mrf.mxu0
        %v1829 = vadd.f32 %v1614, %v1828
        %1830 = vmatprep.mubr.f32.mxu0 0.0
        %1831 = vmatmul.mubr.f32.gmra.mxu0 %v271
        %v1832 = vpop.f32.mrf.mxu0
        %v1833 = vadd.f32 %v1618, %v1832
        %v1834 = vpop.f32.mrf.mxu0
        %v1835 = vadd.f32 %v1620, %v1834
        %1836 = vmatprep.mubr.f32.mxu0 0.0
        %1837 = vmatmul.mubr.f32.gmra.mxu0 %v274
        %v1838 = vpop.f32.mrf.mxu0
        %v1839 = vadd.f32 %v1624, %v1838
        %v1840 = vpop.f32.mrf.mxu0
        %v1841 = vadd.f32 %v1626, %v1840
        %1842 = vmatprep.mubr.f32.mxu0 0.0
        %1843 = vmatmul.mubr.f32.gmra.mxu0 %v277
        %v1844 = vpop.f32.mrf.mxu0
        %v1845 = vadd.f32 %v1630, %v1844
        %v1846 = vpop.f32.mrf.mxu0
        %v1847 = vadd.f32 %v1632, %v1846
        %1848 = vmatprep.mubr.f32.mxu0 0.0
        %1849 = vmatmul.mubr.f32.gmra.mxu0 %v280
        %v1850 = vpop.f32.mrf.mxu0
        %v1851 = vadd.f32 %v1636, %v1850
        %v1852 = vpop.f32.mrf.mxu0
        %v1853 = vadd.f32 %v1638, %v1852
        %1854 = vmatprep.mubr.f32.mxu0 0.0
        %1855 = vmatmul.mubr.f32.gmra.mxu0 %v283
        %v1856 = vpop.f32.mrf.mxu0
        %v1857 = vadd.f32 %v1642, %v1856
        %v1858 = vpop.f32.mrf.mxu0
        %v1859 = vadd.f32 %v1644, %v1858
        %1860 = vmatprep.mubr.f32.mxu0 0.0
        %1861 = vmatmul.mubr.f32.gmra.mxu0 %v286
        %v1862 = vpop.f32.mrf.mxu0
        %v1863 = vadd.f32 %v1648, %v1862
        %v1864 = vpop.f32.mrf.mxu0
        %v1865 = vadd.f32 %v1650, %v1864
        %1866 = vmatprep.mubr.f32.mxu0 0.0
        %1867 = vmatmul.mubr.f32.gmra.mxu0 %v289
        %v1868 = vpop.f32.mrf.mxu0
        %v1869 = vadd.f32 %v1654, %v1868
        %v1870 = vpop.f32.mrf.mxu0
        %v1871 = vadd.f32 %v1656, %v1870
        %1872 = vmatprep.mubr.f32.mxu0 0.0
        %1873 = vmatmul.mubr.f32.gmra.mxu0 %v292
        %v1874 = vpop.f32.mrf.mxu0
        %v1875 = vadd.f32 %v1660, %v1874
        %v1876 = vpop.f32.mrf.mxu0
        %v1877 = vadd.f32 %v1662, %v1876
        %1878 = vmatprep.mubr.f32.mxu0 0.0
        %1879 = vmatmul.mubr.f32.gmra.mxu0 %v295
        %v1880 = vpop.f32.mrf.mxu0
        %v1881 = vadd.f32 %v1666, %v1880
        %v1882 = vpop.f32.mrf.mxu0
        %v1883 = vadd.f32 %v1668, %v1882
        %1884 = vmatprep.mubr.f32.mxu0 0.0
        %1885 = vmatmul.mubr.f32.gmra.mxu0 %v298
        %v1886 = vpop.f32.mrf.mxu0
        %v1887 = vadd.f32 %v1672, %v1886
        %v1888 = vpop.f32.mrf.mxu0
        %v1889 = vadd.f32 %v1674, %v1888
        %1890 = vmatprep.mubr.f32.mxu0 0.0
        %1891 = vmatmul.mubr.f32.gmra.mxu0 %v301
        %v1892 = vpop.f32.mrf.mxu0
        %v1893 = vadd.f32 %v1678, %v1892
        %v1894 = vpop.f32.mrf.mxu0
        %v1895 = vadd.f32 %v1680, %v1894
        %1896 = vmatprep.mubr.f32.mxu0 0.0
        %1897 = vmatmul.mubr.f32.gmra.mxu0 %v304
        %v1898 = vpop.f32.mrf.mxu0
        %v1899 = vadd.f32 %v1684, %v1898
        %v1900 = vpop.f32.mrf.mxu0
        %v1901 = vadd.f32 %v1686, %v1900
        %1902 = vmatprep.mubr.f32.mxu0 0.0
        %1903 = vmatmul.mubr.f32.gmra.mxu0 %v307
        %v1904 = vpop.f32.mrf.mxu0
        %v1905 = vadd.f32 %v1690, %v1904
        %v1906 = vpop.f32.mrf.mxu0
        %v1907 = vadd.f32 %v1692, %v1906
        %1908 = vmatprep.mubr.f32.mxu0 0.0
        %1909 = vmatmul.mubr.f32.gmra.mxu0 %v310
        %v1910 = vpop.f32.mrf.mxu0
        %v1911 = vadd.f32 %v1696, %v1910
        %v1912 = vpop.f32.mrf.mxu0
        %v1913 = vadd.f32 %v1698, %v1912
        %1914 = vmatprep.mubr.f32.mxu0 0.0
        %1915 = vmatmul.mubr.f32.gmra.mxu0 %v313
        %v1916 = vpop.f32.mrf.mxu0
        %v1917 = vadd.f32 %v1702, %v1916
        %v1918 = vpop.f32.mrf.mxu0
        %v1919 = vadd.f32 %v1704, %v1918
        %1920 = vmatprep.mubr.f32.mxu0 0.0
        %1921 = vmatmul.mubr.f32.gmra.mxu0 %v316
        %v1922 = vpop.f32.mrf.mxu0
        %v1923 = vadd.f32 %v1708, %v1922
        %v1924 = vpop.f32.mrf.mxu0
        %v1925 = vadd.f32 %v1710, %v1924
        %1926 = vdwg.mxu0
        %v1927 = vmul.f32 %v919, 0.5
        %v1928 = vmul.f32 %v921, 0.5
        %v1929 = vmul.f32 %v1349, 0.5
        %v1930 = vmul.f32 %v1351, 0.5
        %v1931 = vmul.f32 %v1779, 0.5
        %v1932 = vmul.f32 %v1781, 0.5
        %v1933 = vmul.f32 %v925, 0.5
        %v1934 = vmul.f32 %v927, 0.5
        %v1935 = vmul.f32 %v1355, 0.5
        %v1936 = vmul.f32 %v1357, 0.5
        %v1937 = vmul.f32 %v1785, 0.5
        %v1938 = vmul.f32 %v1787, 0.5
        %v1939 = vmul.f32 %v931, 0.5
        %v1940 = vmul.f32 %v933, 0.5
        %v1941 = vmul.f32 %v1361, 0.5
        %v1942 = vmul.f32 %v1363, 0.5
        %v1943 = vmul.f32 %v1791, 0.5
        %v1944 = vmul.f32 %v1793, 0.5
        %v1945 = vmul.f32 %v937, 0.5
        %v1946 = vmul.f32 %v939, 0.5
        %v1947 = vmul.f32 %v1367, 0.5
        %v1948 = vmul.f32 %v1369, 0.5
        %v1949 = vmul.f32 %v1797, 0.5
        %v1950 = vmul.f32 %v1799, 0.5
        %v1951 = vmul.f32 %v943, 0.5
        %v1952 = vmul.f32 %v945, 0.5
        %v1953 = vmul.f32 %v1373, 0.5
        %v1954 = vmul.f32 %v1375, 0.5
        %v1955 = vmul.f32 %v1803, 0.5
        %v1956 = vmul.f32 %v1805, 0.5
        %v1957 = vmul.f32 %v949, 0.5
        %v1958 = vmul.f32 %v951, 0.5
        %v1959 = vmul.f32 %v1379, 0.5
        %v1960 = vmul.f32 %v1381, 0.5
        %v1961 = vmul.f32 %v1809, 0.5
        %v1962 = vmul.f32 %v1811, 0.5
        %v1963 = vmul.f32 %v955, 0.5
        %v1964 = vmul.f32 %v957, 0.5
        %v1965 = vmul.f32 %v1385, 0.5
        %v1966 = vmul.f32 %v1387, 0.5
        %v1967 = vmul.f32 %v1815, 0.5
        %v1968 = vmul.f32 %v1817, 0.5
        %v1969 = vmul.f32 %v961, 0.5
        %v1970 = vmul.f32 %v963, 0.5
        %v1971 = vmul.f32 %v1391, 0.5
        %v1972 = vmul.f32 %v1393, 0.5
        %v1973 = vmul.f32 %v1821, 0.5
        %v1974 = vmul.f32 %v1823, 0.5
        %v1975 = vmul.f32 %v967, 0.5
        %v1976 = vmul.f32 %v969, 0.5
        %v1977 = vmul.f32 %v1397, 0.5
        %v1978 = vmul.f32 %v1399, 0.5
        %v1979 = vmul.f32 %v1827, 0.5
        %v1980 = vmul.f32 %v1829, 0.5
        %v1981 = vmul.f32 %v973, 0.5
        %v1982 = vmul.f32 %v975, 0.5
        %v1983 = vmul.f32 %v1403, 0.5
        %v1984 = vmul.f32 %v1405, 0.5
        %v1985 = vmul.f32 %v1833, 0.5
        %v1986 = vmul.f32 %v1835, 0.5
        %v1987 = vmul.f32 %v979, 0.5
        %v1988 = vmul.f32 %v981, 0.5
        %v1989 = vmul.f32 %v1409, 0.5
        %v1990 = vmul.f32 %v1411, 0.5
        %v1991 = vmul.f32 %v1839, 0.5
        %v1992 = vmul.f32 %v1841, 0.5
        %v1993 = vmul.f32 %v985, 0.5
        %v1994 = vmul.f32 %v987, 0.5
        %v1995 = vmul.f32 %v1415, 0.5
        %v1996 = vmul.f32 %v1417, 0.5
        %v1997 = vmul.f32 %v1845, 0.5
        %v1998 = vmul.f32 %v1847, 0.5
        %v1999 = vmul.f32 %v991, 0.5
        %v2000 = vmul.f32 %v993, 0.5
        %v2001 = vmul.f32 %v1421, 0.5
        %v2002 = vmul.f32 %v1423, 0.5
        %v2003 = vmul.f32 %v1851, 0.5
        %v2004 = vmul.f32 %v1853, 0.5
        %v2005 = vmul.f32 %v997, 0.5
        %v2006 = vmul.f32 %v999, 0.5
        %v2007 = vmul.f32 %v1427, 0.5
        %v2008 = vmul.f32 %v1429, 0.5
        %v2009 = vmul.f32 %v1857, 0.5
        %v2010 = vmul.f32 %v1859, 0.5
        %v2011 = vmul.f32 %v1003, 0.5
        %v2012 = vmul.f32 %v1005, 0.5
        %v2013 = vmul.f32 %v1433, 0.5
        %v2014 = vmul.f32 %v1435, 0.5
        %v2015 = vmul.f32 %v1863, 0.5
        %v2016 = vmul.f32 %v1865, 0.5
        %v2017 = vmul.f32 %v1009, 0.5
        %v2018 = vmul.f32 %v1011, 0.5
        %v2019 = vmul.f32 %v1439, 0.5
        %v2020 = vmul.f32 %v1441, 0.5
        %v2021 = vmul.f32 %v1869, 0.5
        %v2022 = vmul.f32 %v1871, 0.5
        %v2023 = vmul.f32 %v1015, 0.5
        %v2024 = vmul.f32 %v1017, 0.5
        %v2025 = vmul.f32 %v1445, 0.5
        %v2026 = vmul.f32 %v1447, 0.5
        %v2027 = vmul.f32 %v1875, 0.5
        %v2028 = vmul.f32 %v1877, 0.5
        %v2029 = vmul.f32 %v1021, 0.5
        %v2030 = vmul.f32 %v1023, 0.5
        %v2031 = vmul.f32 %v1451, 0.5
        %v2032 = vmul.f32 %v1453, 0.5
        %v2033 = vmul.f32 %v1881, 0.5
        %v2034 = vmul.f32 %v1883, 0.5
        %v2035 = vmul.f32 %v1027, 0.5
        %v2036 = vmul.f32 %v1029, 0.5
        %v2037 = vmul.f32 %v1457, 0.5
        %v2038 = vmul.f32 %v1459, 0.5
        %v2039 = vmul.f32 %v1887, 0.5
        %v2040 = vmul.f32 %v1889, 0.5
        %v2041 = vmul.f32 %v1033, 0.5
        %v2042 = vmul.f32 %v1035, 0.5
        %v2043 = vmul.f32 %v1463, 0.5
        %v2044 = vmul.f32 %v1465, 0.5
        %v2045 = vmul.f32 %v1893, 0.5
        %v2046 = vmul.f32 %v1895, 0.5
        %v2047 = vmul.f32 %v1039, 0.5
        %v2048 = vmul.f32 %v1041, 0.5
        %v2049 = vmul.f32 %v1469, 0.5
        %v2050 = vmul.f32 %v1471, 0.5
        %v2051 = vmul.f32 %v1899, 0.5
        %v2052 = vmul.f32 %v1901, 0.5
        %v2053 = vmul.f32 %v1045, 0.5
        %v2054 = vmul.f32 %v1047, 0.5
        %v2055 = vmul.f32 %v1475, 0.5
        %v2056 = vmul.f32 %v1477, 0.5
        %v2057 = vmul.f32 %v1905, 0.5
        %v2058 = vmul.f32 %v1907, 0.5
        %v2059 = vmul.f32 %v1051, 0.5
        %v2060 = vmul.f32 %v1053, 0.5
        %v2061 = vmul.f32 %v1481, 0.5
        %v2062 = vmul.f32 %v1483, 0.5
        %v2063 = vmul.f32 %v1911, 0.5
        %v2064 = vmul.f32 %v1913, 0.5
        %v2065 = vmul.f32 %v1057, 0.5
        %v2066 = vmul.f32 %v1059, 0.5
        %v2067 = vmul.f32 %v1487, 0.5
        %v2068 = vmul.f32 %v1489, 0.5
        %v2069 = vmul.f32 %v1917, 0.5
        %v2070 = vmul.f32 %v1919, 0.5
        %v2071 = vmul.f32 %v1063, 0.5
        %v2072 = vmul.f32 %v1065, 0.5
        %v2073 = vmul.f32 %v1493, 0.5
        %v2074 = vmul.f32 %v1495, 0.5
        %v2075 = vmul.f32 %v1923, 0.5
        %v2076 = vmul.f32 %v1925, 0.5
        %v2077 = vmul.f32 %v919, 0.70710677
        %v2078 = vmul.f32 %v921, 0.70710677
        %v2079 = vmul.f32 %v1349, 0.70710677
        %v2080 = vmul.f32 %v1351, 0.70710677
        %v2081 = vmul.f32 %v1779, 0.70710677
        %v2082 = vmul.f32 %v1781, 0.70710677
        %v2083 = vmul.f32 %v925, 0.70710677
        %v2084 = vmul.f32 %v927, 0.70710677
        %v2085 = vmul.f32 %v1355, 0.70710677
        %v2086 = vmul.f32 %v1357, 0.70710677
        %v2087 = vmul.f32 %v1785, 0.70710677
        %v2088 = vmul.f32 %v1787, 0.70710677
        %v2089 = vmul.f32 %v931, 0.70710677
        %v2090 = vmul.f32 %v933, 0.70710677
        %v2091 = vmul.f32 %v1361, 0.70710677
        %v2092 = vmul.f32 %v1363, 0.70710677
        %v2093 = vmul.f32 %v1791, 0.70710677
        %v2094 = vmul.f32 %v1793, 0.70710677
        %v2095 = vmul.f32 %v937, 0.70710677
        %v2096 = vmul.f32 %v939, 0.70710677
        %v2097 = vmul.f32 %v1367, 0.70710677
        %v2098 = vmul.f32 %v1369, 0.70710677
        %v2099 = vmul.f32 %v1797, 0.70710677
        %v2100 = vmul.f32 %v1799, 0.70710677
        %v2101 = vmul.f32 %v943, 0.70710677
        %v2102 = vmul.f32 %v945, 0.70710677
        %v2103 = vmul.f32 %v1373, 0.70710677
        %v2104 = vmul.f32 %v1375, 0.70710677
        %v2105 = vmul.f32 %v1803, 0.70710677
        %v2106 = vmul.f32 %v1805, 0.70710677
        %v2107 = vmul.f32 %v949, 0.70710677
        %v2108 = vmul.f32 %v951, 0.70710677
        %v2109 = vmul.f32 %v1379, 0.70710677
        %v2110 = vmul.f32 %v1381, 0.70710677
        %v2111 = vmul.f32 %v1809, 0.70710677
        %v2112 = vmul.f32 %v1811, 0.70710677
        %v2113 = vmul.f32 %v955, 0.70710677
        %v2114 = vmul.f32 %v957, 0.70710677
        %v2115 = vmul.f32 %v1385, 0.70710677
        %v2116 = vmul.f32 %v1387, 0.70710677
        %v2117 = vmul.f32 %v1815, 0.70710677
        %v2118 = vmul.f32 %v1817, 0.70710677
        %v2119 = vmul.f32 %v961, 0.70710677
        %v2120 = vmul.f32 %v963, 0.70710677
        %v2121 = vmul.f32 %v1391, 0.70710677
        %v2122 = vmul.f32 %v1393, 0.70710677
        %v2123 = vmul.f32 %v1821, 0.70710677
        %v2124 = vmul.f32 %v1823, 0.70710677
        %v2125 = vmul.f32 %v967, 0.70710677
        %v2126 = vmul.f32 %v969, 0.70710677
        %v2127 = vmul.f32 %v1397, 0.70710677
        %v2128 = vmul.f32 %v1399, 0.70710677
        %v2129 = vmul.f32 %v1827, 0.70710677
        %v2130 = vmul.f32 %v1829, 0.70710677
        %v2131 = vmul.f32 %v973, 0.70710677
        %v2132 = vmul.f32 %v975, 0.70710677
        %v2133 = vmul.f32 %v1403, 0.70710677
        %v2134 = vmul.f32 %v1405, 0.70710677
        %v2135 = vmul.f32 %v1833, 0.70710677
        %v2136 = vmul.f32 %v1835, 0.70710677
        %v2137 = vmul.f32 %v979, 0.70710677
        %v2138 = vmul.f32 %v981, 0.70710677
        %v2139 = vmul.f32 %v1409, 0.70710677
        %v2140 = vmul.f32 %v1411, 0.70710677
        %v2141 = vmul.f32 %v1839, 0.70710677
        %v2142 = vmul.f32 %v1841, 0.70710677
        %v2143 = vmul.f32 %v985, 0.70710677
        %v2144 = vmul.f32 %v987, 0.70710677
        %v2145 = vmul.f32 %v1415, 0.70710677
        %v2146 = vmul.f32 %v1417, 0.70710677
        %v2147 = vmul.f32 %v1845, 0.70710677
        %v2148 = vmul.f32 %v1847, 0.70710677
        %v2149 = vmul.f32 %v991, 0.70710677
        %v2150 = vmul.f32 %v993, 0.70710677
        %v2151 = vmul.f32 %v1421, 0.70710677
        %v2152 = vmul.f32 %v1423, 0.70710677
        %v2153 = vmul.f32 %v1851, 0.70710677
        %v2154 = vmul.f32 %v1853, 0.70710677
        %v2155 = vmul.f32 %v997, 0.70710677
        %v2156 = vmul.f32 %v999, 0.70710677
        %v2157 = vmul.f32 %v1427, 0.70710677
        %v2158 = vmul.f32 %v1429, 0.70710677
        %v2159 = vmul.f32 %v1857, 0.70710677
        %v2160 = vmul.f32 %v1859, 0.70710677
        %v2161 = vmul.f32 %v1003, 0.70710677
        %v2162 = vmul.f32 %v1005, 0.70710677
        %v2163 = vmul.f32 %v1433, 0.70710677
        %v2164 = vmul.f32 %v1435, 0.70710677
        %v2165 = vmul.f32 %v1863, 0.70710677
        %v2166 = vmul.f32 %v1865, 0.70710677
        %v2167 = vmul.f32 %v1009, 0.70710677
        %v2168 = vmul.f32 %v1011, 0.70710677
        %v2169 = vmul.f32 %v1439, 0.70710677
        %v2170 = vmul.f32 %v1441, 0.70710677
        %v2171 = vmul.f32 %v1869, 0.70710677
        %v2172 = vmul.f32 %v1871, 0.70710677
        %v2173 = vmul.f32 %v1015, 0.70710677
        %v2174 = vmul.f32 %v1017, 0.70710677
        %v2175 = vmul.f32 %v1445, 0.70710677
        %v2176 = vmul.f32 %v1447, 0.70710677
        %v2177 = vmul.f32 %v1875, 0.70710677
        %v2178 = vmul.f32 %v1877, 0.70710677
        %v2179 = vmul.f32 %v1021, 0.70710677
        %v2180 = vmul.f32 %v1023, 0.70710677
        %v2181 = vmul.f32 %v1451, 0.70710677
        %v2182 = vmul.f32 %v1453, 0.70710677
        %v2183 = vmul.f32 %v1881, 0.70710677
        %v2184 = vmul.f32 %v1883, 0.70710677
        %v2185 = vmul.f32 %v1027, 0.70710677
        %v2186 = vmul.f32 %v1029, 0.70710677
        %v2187 = vmul.f32 %v1457, 0.70710677
        %v2188 = vmul.f32 %v1459, 0.70710677
        %v2189 = vmul.f32 %v1887, 0.70710677
        %v2190 = vmul.f32 %v1889, 0.70710677
        %v2191 = vmul.f32 %v1033, 0.70710677
        %v2192 = vmul.f32 %v1035, 0.70710677
        %v2193 = vmul.f32 %v1463, 0.70710677
        %v2194 = vmul.f32 %v1465, 0.70710677
        %v2195 = vmul.f32 %v1893, 0.70710677
        %v2196 = vmul.f32 %v1895, 0.70710677
        %v2197 = vmul.f32 %v1039, 0.70710677
        %v2198 = vmul.f32 %v1041, 0.70710677
        %v2199 = vmul.f32 %v1469, 0.70710677
        %v2200 = vmul.f32 %v1471, 0.70710677
        %v2201 = vmul.f32 %v1899, 0.70710677
        %v2202 = vmul.f32 %v1901, 0.70710677
        %v2203 = vmul.f32 %v1045, 0.70710677
        %v2204 = vmul.f32 %v1047, 0.70710677
        %v2205 = vmul.f32 %v1475, 0.70710677
        %v2206 = vmul.f32 %v1477, 0.70710677
        %v2207 = vmul.f32 %v1905, 0.70710677
        %v2208 = vmul.f32 %v1907, 0.70710677
        %v2209 = vmul.f32 %v1051, 0.70710677
        %v2210 = vmul.f32 %v1053, 0.70710677
        %v2211 = vmul.f32 %v1481, 0.70710677
        %v2212 = vmul.f32 %v1483, 0.70710677
        %v2213 = vmul.f32 %v1911, 0.70710677
        %v2214 = vmul.f32 %v1913, 0.70710677
        %v2215 = vmul.f32 %v1057, 0.70710677
        %v2216 = vmul.f32 %v1059, 0.70710677
        %v2217 = vmul.f32 %v1487, 0.70710677
        %v2218 = vmul.f32 %v1489, 0.70710677
        %v2219 = vmul.f32 %v1917, 0.70710677
        %v2220 = vmul.f32 %v1919, 0.70710677
        %v2221 = vmul.f32 %v1063, 0.70710677
        %v2222 = vmul.f32 %v1065, 0.70710677
        %v2223 = vmul.f32 %v1493, 0.70710677
        %v2224 = vmul.f32 %v1495, 0.70710677
        %v2225 = vmul.f32 %v1923, 0.70710677
        %v2226 = vmul.f32 %v1925, 0.70710677
        %v2227 = verf.f32.pop %v2077
        %v2228 = verf.f32.pop %v2078
        %v2229 = verf.f32.pop %v2079
        %v2230 = verf.f32.pop %v2080
        %v2231 = verf.f32.pop %v2081
        %v2232 = verf.f32.pop %v2082
        %v2233 = verf.f32.pop %v2083
        %v2234 = verf.f32.pop %v2084
        %v2235 = verf.f32.pop %v2085
        %v2236 = verf.f32.pop %v2086
        %v2237 = verf.f32.pop %v2087
        %v2238 = verf.f32.pop %v2088
        %v2239 = verf.f32.pop %v2089
        %v2240 = verf.f32.pop %v2090
        %v2241 = verf.f32.pop %v2091
        %v2242 = verf.f32.pop %v2092
        %v2243 = verf.f32.pop %v2093
        %v2244 = verf.f32.pop %v2094
        %v2245 = verf.f32.pop %v2095
        %v2246 = verf.f32.pop %v2096
        %v2247 = verf.f32.pop %v2097
        %v2248 = verf.f32.pop %v2098
        %v2249 = verf.f32.pop %v2099
        %v2250 = verf.f32.pop %v2100
        %v2251 = verf.f32.pop %v2101
        %v2252 = verf.f32.pop %v2102
        %v2253 = verf.f32.pop %v2103
        %v2254 = verf.f32.pop %v2104
        %v2255 = verf.f32.pop %v2105
        %v2256 = verf.f32.pop %v2106
        %v2257 = verf.f32.pop %v2107
        %v2258 = verf.f32.pop %v2108
        %v2259 = verf.f32.pop %v2109
        %v2260 = verf.f32.pop %v2110
        %v2261 = verf.f32.pop %v2111
        %v2262 = verf.f32.pop %v2112
        %v2263 = verf.f32.pop %v2113
        %v2264 = verf.f32.pop %v2114
        %v2265 = verf.f32.pop %v2115
        %v2266 = verf.f32.pop %v2116
        %v2267 = verf.f32.pop %v2117
        %v2268 = verf.f32.pop %v2118
        %v2269 = verf.f32.pop %v2119
        %v2270 = verf.f32.pop %v2120
        %v2271 = verf.f32.pop %v2121
        %v2272 = verf.f32.pop %v2122
        %v2273 = verf.f32.pop %v2123
        %v2274 = verf.f32.pop %v2124
        %v2275 = verf.f32.pop %v2125
        %v2276 = verf.f32.pop %v2126
        %v2277 = verf.f32.pop %v2127
        %v2278 = verf.f32.pop %v2128
        %v2279 = verf.f32.pop %v2129
        %v2280 = verf.f32.pop %v2130
        %v2281 = verf.f32.pop %v2131
        %v2282 = verf.f32.pop %v2132
        %v2283 = verf.f32.pop %v2133
        %v2284 = verf.f32.pop %v2134
        %v2285 = verf.f32.pop %v2135
        %v2286 = verf.f32.pop %v2136
        %v2287 = verf.f32.pop %v2137
        %v2288 = verf.f32.pop %v2138
        %v2289 = verf.f32.pop %v2139
        %v2290 = verf.f32.pop %v2140
        %v2291 = verf.f32.pop %v2141
        %v2292 = verf.f32.pop %v2142
        %v2293 = verf.f32.pop %v2143
        %v2294 = verf.f32.pop %v2144
        %v2295 = verf.f32.pop %v2145
        %v2296 = verf.f32.pop %v2146
        %v2297 = verf.f32.pop %v2147
        %v2298 = verf.f32.pop %v2148
        %v2299 = verf.f32.pop %v2149
        %v2300 = verf.f32.pop %v2150
        %v2301 = verf.f32.pop %v2151
        %v2302 = verf.f32.pop %v2152
        %v2303 = verf.f32.pop %v2153
        %v2304 = verf.f32.pop %v2154
        %v2305 = verf.f32.pop %v2155
        %v2306 = verf.f32.pop %v2156
        %v2307 = verf.f32.pop %v2157
        %v2308 = verf.f32.pop %v2158
        %v2309 = verf.f32.pop %v2159
        %v2310 = verf.f32.pop %v2160
        %v2311 = verf.f32.pop %v2161
        %v2312 = verf.f32.pop %v2162
        %v2313 = verf.f32.pop %v2163
        %v2314 = verf.f32.pop %v2164
        %v2315 = verf.f32.pop %v2165
        %v2316 = verf.f32.pop %v2166
        %v2317 = verf.f32.pop %v2167
        %v2318 = verf.f32.pop %v2168
        %v2319 = verf.f32.pop %v2169
        %v2320 = verf.f32.pop %v2170
        %v2321 = verf.f32.pop %v2171
        %v2322 = verf.f32.pop %v2172
        %v2323 = verf.f32.pop %v2173
        %v2324 = verf.f32.pop %v2174
        %v2325 = verf.f32.pop %v2175
        %v2326 = verf.f32.pop %v2176
        %v2327 = verf.f32.pop %v2177
        %v2328 = verf.f32.pop %v2178
        %v2329 = verf.f32.pop %v2179
        %v2330 = verf.f32.pop %v2180
        %v2331 = verf.f32.pop %v2181
        %v2332 = verf.f32.pop %v2182
        %v2333 = verf.f32.pop %v2183
        %v2334 = verf.f32.pop %v2184
        %v2335 = verf.f32.pop %v2185
        %v2336 = verf.f32.pop %v2186
        %v2337 = verf.f32.pop %v2187
        %v2338 = verf.f32.pop %v2188
        %v2339 = verf.f32.pop %v2189
        %v2340 = verf.f32.pop %v2190
        %v2341 = verf.f32.pop %v2191
        %v2342 = verf.f32.pop %v2192
        %v2343 = verf.f32.pop %v2193
        %v2344 = verf.f32.pop %v2194
        %v2345 = verf.f32.pop %v2195
        %v2346 = verf.f32.pop %v2196
        %v2347 = verf.f32.pop %v2197
        %v2348 = verf.f32.pop %v2198
        %v2349 = verf.f32.pop %v2199
        %v2350 = verf.f32.pop %v2200
        %v2351 = verf.f32.pop %v2201
        %v2352 = verf.f32.pop %v2202
        %v2353 = verf.f32.pop %v2203
        %v2354 = verf.f32.pop %v2204
        %v2355 = verf.f32.pop %v2205
        %v2356 = verf.f32.pop %v2206
        %v2357 = verf.f32.pop %v2207
        %v2358 = verf.f32.pop %v2208
        %v2359 = verf.f32.pop %v2209
        %v2360 = verf.f32.pop %v2210
        %v2361 = verf.f32.pop %v2211
        %v2362 = verf.f32.pop %v2212
        %v2363 = verf.f32.pop %v2213
        %v2364 = verf.f32.pop %v2214
        %v2365 = verf.f32.pop %v2215
        %v2366 = verf.f32.pop %v2216
        %v2367 = verf.f32.pop %v2217
        %v2368 = verf.f32.pop %v2218
        %v2369 = verf.f32.pop %v2219
        %v2370 = verf.f32.pop %v2220
        %v2371 = verf.f32.pop %v2221
        %v2372 = verf.f32.pop %v2222
        %v2373 = verf.f32.pop %v2223
        %v2374 = verf.f32.pop %v2224
        %v2375 = verf.f32.pop %v2225
        %v2376 = verf.f32.pop %v2226
        %v2377 = vadd.f32 %v2227, 1.0
        %v2378 = vadd.f32 %v2228, 1.0
        %v2379 = vadd.f32 %v2229, 1.0
        %v2380 = vadd.f32 %v2230, 1.0
        %v2381 = vadd.f32 %v2231, 1.0
        %v2382 = vadd.f32 %v2232, 1.0
        %v2383 = vadd.f32 %v2233, 1.0
        %v2384 = vadd.f32 %v2234, 1.0
        %v2385 = vadd.f32 %v2235, 1.0
        %v2386 = vadd.f32 %v2236, 1.0
        %v2387 = vadd.f32 %v2237, 1.0
        %v2388 = vadd.f32 %v2238, 1.0
        %v2389 = vadd.f32 %v2239, 1.0
        %v2390 = vadd.f32 %v2240, 1.0
        %v2391 = vadd.f32 %v2241, 1.0
        %v2392 = vadd.f32 %v2242, 1.0
        %v2393 = vadd.f32 %v2243, 1.0
        %v2394 = vadd.f32 %v2244, 1.0
        %v2395 = vadd.f32 %v2245, 1.0
        %v2396 = vadd.f32 %v2246, 1.0
        %v2397 = vadd.f32 %v2247, 1.0
        %v2398 = vadd.f32 %v2248, 1.0
        %v2399 = vadd.f32 %v2249, 1.0
        %v2400 = vadd.f32 %v2250, 1.0
        %v2401 = vadd.f32 %v2251, 1.0
        %v2402 = vadd.f32 %v2252, 1.0
        %v2403 = vadd.f32 %v2253, 1.0
        %v2404 = vadd.f32 %v2254, 1.0
        %v2405 = vadd.f32 %v2255, 1.0
        %v2406 = vadd.f32 %v2256, 1.0
        %v2407 = vadd.f32 %v2257, 1.0
        %v2408 = vadd.f32 %v2258, 1.0
        %v2409 = vadd.f32 %v2259, 1.0
        %v2410 = vadd.f32 %v2260, 1.0
        %v2411 = vadd.f32 %v2261, 1.0
        %v2412 = vadd.f32 %v2262, 1.0
        %v2413 = vadd.f32 %v2263, 1.0
        %v2414 = vadd.f32 %v2264, 1.0
        %v2415 = vadd.f32 %v2265, 1.0
        %v2416 = vadd.f32 %v2266, 1.0
        %v2417 = vadd.f32 %v2267, 1.0
        %v2418 = vadd.f32 %v2268, 1.0
        %v2419 = vadd.f32 %v2269, 1.0
        %v2420 = vadd.f32 %v2270, 1.0
        %v2421 = vadd.f32 %v2271, 1.0
        %v2422 = vadd.f32 %v2272, 1.0
        %v2423 = vadd.f32 %v2273, 1.0
        %v2424 = vadd.f32 %v2274, 1.0
        %v2425 = vadd.f32 %v2275, 1.0
        %v2426 = vadd.f32 %v2276, 1.0
        %v2427 = vadd.f32 %v2277, 1.0
        %v2428 = vadd.f32 %v2278, 1.0
        %v2429 = vadd.f32 %v2279, 1.0
        %v2430 = vadd.f32 %v2280, 1.0
        %v2431 = vadd.f32 %v2281, 1.0
        %v2432 = vadd.f32 %v2282, 1.0
        %v2433 = vadd.f32 %v2283, 1.0
        %v2434 = vadd.f32 %v2284, 1.0
        %v2435 = vadd.f32 %v2285, 1.0
        %v2436 = vadd.f32 %v2286, 1.0
        %v2437 = vadd.f32 %v2287, 1.0
        %v2438 = vadd.f32 %v2288, 1.0
        %v2439 = vadd.f32 %v2289, 1.0
        %v2440 = vadd.f32 %v2290, 1.0
        %v2441 = vadd.f32 %v2291, 1.0
        %v2442 = vadd.f32 %v2292, 1.0
        %v2443 = vadd.f32 %v2293, 1.0
        %v2444 = vadd.f32 %v2294, 1.0
        %v2445 = vadd.f32 %v2295, 1.0
        %v2446 = vadd.f32 %v2296, 1.0
        %v2447 = vadd.f32 %v2297, 1.0
        %v2448 = vadd.f32 %v2298, 1.0
        %v2449 = vadd.f32 %v2299, 1.0
        %v2450 = vadd.f32 %v2300, 1.0
        %v2451 = vadd.f32 %v2301, 1.0
        %v2452 = vadd.f32 %v2302, 1.0
        %v2453 = vadd.f32 %v2303, 1.0
        %v2454 = vadd.f32 %v2304, 1.0
        %v2455 = vadd.f32 %v2305, 1.0
        %v2456 = vadd.f32 %v2306, 1.0
        %v2457 = vadd.f32 %v2307, 1.0
        %v2458 = vadd.f32 %v2308, 1.0
        %v2459 = vadd.f32 %v2309, 1.0
        %v2460 = vadd.f32 %v2310, 1.0
        %v2461 = vadd.f32 %v2311, 1.0
        %v2462 = vadd.f32 %v2312, 1.0
        %v2463 = vadd.f32 %v2313, 1.0
        %v2464 = vadd.f32 %v2314, 1.0
        %v2465 = vadd.f32 %v2315, 1.0
        %v2466 = vadd.f32 %v2316, 1.0
        %v2467 = vadd.f32 %v2317, 1.0
        %v2468 = vadd.f32 %v2318, 1.0
        %v2469 = vadd.f32 %v2319, 1.0
        %v2470 = vadd.f32 %v2320, 1.0
        %v2471 = vadd.f32 %v2321, 1.0
        %v2472 = vadd.f32 %v2322, 1.0
        %v2473 = vadd.f32 %v2323, 1.0
        %v2474 = vadd.f32 %v2324, 1.0
        %v2475 = vadd.f32 %v2325, 1.0
        %v2476 = vadd.f32 %v2326, 1.0
        %v2477 = vadd.f32 %v2327, 1.0
        %v2478 = vadd.f32 %v2328, 1.0
        %v2479 = vadd.f32 %v2329, 1.0
        %v2480 = vadd.f32 %v2330, 1.0
        %v2481 = vadd.f32 %v2331, 1.0
        %v2482 = vadd.f32 %v2332, 1.0
        %v2483 = vadd.f32 %v2333, 1.0
        %v2484 = vadd.f32 %v2334, 1.0
        %v2485 = vadd.f32 %v2335, 1.0
        %v2486 = vadd.f32 %v2336, 1.0
        %v2487 = vadd.f32 %v2337, 1.0
        %v2488 = vadd.f32 %v2338, 1.0
        %v2489 = vadd.f32 %v2339, 1.0
        %v2490 = vadd.f32 %v2340, 1.0
        %v2491 = vadd.f32 %v2341, 1.0
        %v2492 = vadd.f32 %v2342, 1.0
        %v2493 = vadd.f32 %v2343, 1.0
        %v2494 = vadd.f32 %v2344, 1.0
        %v2495 = vadd.f32 %v2345, 1.0
        %v2496 = vadd.f32 %v2346, 1.0
        %v2497 = vadd.f32 %v2347, 1.0
        %v2498 = vadd.f32 %v2348, 1.0
        %v2499 = vadd.f32 %v2349, 1.0
        %v2500 = vadd.f32 %v2350, 1.0
        %v2501 = vadd.f32 %v2351, 1.0
        %v2502 = vadd.f32 %v2352, 1.0
        %v2503 = vadd.f32 %v2353, 1.0
        %v2504 = vadd.f32 %v2354, 1.0
        %v2505 = vadd.f32 %v2355, 1.0
        %v2506 = vadd.f32 %v2356, 1.0
        %v2507 = vadd.f32 %v2357, 1.0
        %v2508 = vadd.f32 %v2358, 1.0
        %v2509 = vadd.f32 %v2359, 1.0
        %v2510 = vadd.f32 %v2360, 1.0
        %v2511 = vadd.f32 %v2361, 1.0
        %v2512 = vadd.f32 %v2362, 1.0
        %v2513 = vadd.f32 %v2363, 1.0
        %v2514 = vadd.f32 %v2364, 1.0
        %v2515 = vadd.f32 %v2365, 1.0
        %v2516 = vadd.f32 %v2366, 1.0
        %v2517 = vadd.f32 %v2367, 1.0
        %v2518 = vadd.f32 %v2368, 1.0
        %v2519 = vadd.f32 %v2369, 1.0
        %v2520 = vadd.f32 %v2370, 1.0
        %v2521 = vadd.f32 %v2371, 1.0
        %v2522 = vadd.f32 %v2372, 1.0
        %v2523 = vadd.f32 %v2373, 1.0
        %v2524 = vadd.f32 %v2374, 1.0
        %v2525 = vadd.f32 %v2375, 1.0
        %v2526 = vadd.f32 %v2376, 1.0
        %v2527 = vmul.f32 %v1927, %v2377
        %v2528 = vmul.f32 %v1928, %v2378
        %v2529 = vmul.f32 %v1929, %v2379
        %v2530 = vmul.f32 %v1930, %v2380
        %v2531 = vmul.f32 %v1931, %v2381
        %v2532 = vmul.f32 %v1932, %v2382
        %v2533 = vmul.f32 %v1933, %v2383
        %v2534 = vmul.f32 %v1934, %v2384
        %v2535 = vmul.f32 %v1935, %v2385
        %v2536 = vmul.f32 %v1936, %v2386
        %v2537 = vmul.f32 %v1937, %v2387
        %v2538 = vmul.f32 %v1938, %v2388
        %v2539 = vmul.f32 %v1939, %v2389
        %v2540 = vmul.f32 %v1940, %v2390
        %v2541 = vmul.f32 %v1941, %v2391
        %v2542 = vmul.f32 %v1942, %v2392
        %v2543 = vmul.f32 %v1943, %v2393
        %v2544 = vmul.f32 %v1944, %v2394
        %v2545 = vmul.f32 %v1945, %v2395
        %v2546 = vmul.f32 %v1946, %v2396
        %v2547 = vmul.f32 %v1947, %v2397
        %v2548 = vmul.f32 %v1948, %v2398
        %v2549 = vmul.f32 %v1949, %v2399
        %v2550 = vmul.f32 %v1950, %v2400
        %v2551 = vmul.f32 %v1951, %v2401
        %v2552 = vmul.f32 %v1952, %v2402
        %v2553 = vmul.f32 %v1953, %v2403
        %v2554 = vmul.f32 %v1954, %v2404
        %v2555 = vmul.f32 %v1955, %v2405
        %v2556 = vmul.f32 %v1956, %v2406
        %v2557 = vmul.f32 %v1957, %v2407
        %v2558 = vmul.f32 %v1958, %v2408
        %v2559 = vmul.f32 %v1959, %v2409
        %v2560 = vmul.f32 %v1960, %v2410
        %v2561 = vmul.f32 %v1961, %v2411
        %v2562 = vmul.f32 %v1962, %v2412
        %v2563 = vmul.f32 %v1963, %v2413
        %v2564 = vmul.f32 %v1964, %v2414
        %v2565 = vmul.f32 %v1965, %v2415
        %v2566 = vmul.f32 %v1966, %v2416
        %v2567 = vmul.f32 %v1967, %v2417
        %v2568 = vmul.f32 %v1968, %v2418
        %v2569 = vmul.f32 %v1969, %v2419
        %v2570 = vmul.f32 %v1970, %v2420
        %v2571 = vmul.f32 %v1971, %v2421
        %v2572 = vmul.f32 %v1972, %v2422
        %v2573 = vmul.f32 %v1973, %v2423
        %v2574 = vmul.f32 %v1974, %v2424
        %v2575 = vmul.f32 %v1975, %v2425
        %v2576 = vmul.f32 %v1976, %v2426
        %v2577 = vmul.f32 %v1977, %v2427
        %v2578 = vmul.f32 %v1978, %v2428
        %v2579 = vmul.f32 %v1979, %v2429
        %v2580 = vmul.f32 %v1980, %v2430
        %v2581 = vmul.f32 %v1981, %v2431
        %v2582 = vmul.f32 %v1982, %v2432
        %v2583 = vmul.f32 %v1983, %v2433
        %v2584 = vmul.f32 %v1984, %v2434
        %v2585 = vmul.f32 %v1985, %v2435
        %v2586 = vmul.f32 %v1986, %v2436
        %v2587 = vmul.f32 %v1987, %v2437
        %v2588 = vmul.f32 %v1988, %v2438
        %v2589 = vmul.f32 %v1989, %v2439
        %v2590 = vmul.f32 %v1990, %v2440
        %v2591 = vmul.f32 %v1991, %v2441
        %v2592 = vmul.f32 %v1992, %v2442
        %v2593 = vmul.f32 %v1993, %v2443
        %v2594 = vmul.f32 %v1994, %v2444
        %v2595 = vmul.f32 %v1995, %v2445
        %v2596 = vmul.f32 %v1996, %v2446
        %v2597 = vmul.f32 %v1997, %v2447
        %v2598 = vmul.f32 %v1998, %v2448
        %v2599 = vmul.f32 %v1999, %v2449
        %v2600 = vmul.f32 %v2000, %v2450
        %v2601 = vmul.f32 %v2001, %v2451
        %v2602 = vmul.f32 %v2002, %v2452
        %v2603 = vmul.f32 %v2003, %v2453
        %v2604 = vmul.f32 %v2004, %v2454
        %v2605 = vmul.f32 %v2005, %v2455
        %v2606 = vmul.f32 %v2006, %v2456
        %v2607 = vmul.f32 %v2007, %v2457
        %v2608 = vmul.f32 %v2008, %v2458
        %v2609 = vmul.f32 %v2009, %v2459
        %v2610 = vmul.f32 %v2010, %v2460
        %v2611 = vmul.f32 %v2011, %v2461
        %v2612 = vmul.f32 %v2012, %v2462
        %v2613 = vmul.f32 %v2013, %v2463
        %v2614 = vmul.f32 %v2014, %v2464
        %v2615 = vmul.f32 %v2015, %v2465
        %v2616 = vmul.f32 %v2016, %v2466
        %v2617 = vmul.f32 %v2017, %v2467
        %v2618 = vmul.f32 %v2018, %v2468
        %v2619 = vmul.f32 %v2019, %v2469
        %v2620 = vmul.f32 %v2020, %v2470
        %v2621 = vmul.f32 %v2021, %v2471
        %v2622 = vmul.f32 %v2022, %v2472
        %v2623 = vmul.f32 %v2023, %v2473
        %v2624 = vmul.f32 %v2024, %v2474
        %v2625 = vmul.f32 %v2025, %v2475
        %v2626 = vmul.f32 %v2026, %v2476
        %v2627 = vmul.f32 %v2027, %v2477
        %v2628 = vmul.f32 %v2028, %v2478
        %v2629 = vmul.f32 %v2029, %v2479
        %v2630 = vmul.f32 %v2030, %v2480
        %v2631 = vmul.f32 %v2031, %v2481
        %v2632 = vmul.f32 %v2032, %v2482
        %v2633 = vmul.f32 %v2033, %v2483
        %v2634 = vmul.f32 %v2034, %v2484
        %v2635 = vmul.f32 %v2035, %v2485
        %v2636 = vmul.f32 %v2036, %v2486
        %v2637 = vmul.f32 %v2037, %v2487
        %v2638 = vmul.f32 %v2038, %v2488
        %v2639 = vmul.f32 %v2039, %v2489
        %v2640 = vmul.f32 %v2040, %v2490
        %v2641 = vmul.f32 %v2041, %v2491
        %v2642 = vmul.f32 %v2042, %v2492
        %v2643 = vmul.f32 %v2043, %v2493
        %v2644 = vmul.f32 %v2044, %v2494
        %v2645 = vmul.f32 %v2045, %v2495
        %v2646 = vmul.f32 %v2046, %v2496
        %v2647 = vmul.f32 %v2047, %v2497
        %v2648 = vmul.f32 %v2048, %v2498
        %v2649 = vmul.f32 %v2049, %v2499
        %v2650 = vmul.f32 %v2050, %v2500
        %v2651 = vmul.f32 %v2051, %v2501
        %v2652 = vmul.f32 %v2052, %v2502
        %v2653 = vmul.f32 %v2053, %v2503
        %v2654 = vmul.f32 %v2054, %v2504
        %v2655 = vmul.f32 %v2055, %v2505
        %v2656 = vmul.f32 %v2056, %v2506
        %v2657 = vmul.f32 %v2057, %v2507
        %v2658 = vmul.f32 %v2058, %v2508
        %v2659 = vmul.f32 %v2059, %v2509
        %v2660 = vmul.f32 %v2060, %v2510
        %v2661 = vmul.f32 %v2061, %v2511
        %v2662 = vmul.f32 %v2062, %v2512
        %v2663 = vmul.f32 %v2063, %v2513
        %v2664 = vmul.f32 %v2064, %v2514
        %v2665 = vmul.f32 %v2065, %v2515
        %v2666 = vmul.f32 %v2066, %v2516
        %v2667 = vmul.f32 %v2067, %v2517
        %v2668 = vmul.f32 %v2068, %v2518
        %v2669 = vmul.f32 %v2069, %v2519
        %v2670 = vmul.f32 %v2070, %v2520
        %v2671 = vmul.f32 %v2071, %v2521
        %v2672 = vmul.f32 %v2072, %v2522
        %v2673 = vmul.f32 %v2073, %v2523
        %v2674 = vmul.f32 %v2074, %v2524
        %v2675 = vmul.f32 %v2075, %v2525
        %v2676 = vmul.f32 %v2076, %v2526
        %2677 = vst [vmem:[%s238] sm:$0xff] %v2527
        %2678 = vst [vmem:[%s238 + $0x8] sm:$0xff] %v2528
        %2679 = vst [vmem:[%s238 + $0x10] sm:$0xff] %v2529
        %2680 = vst [vmem:[%s238 + $0x18] sm:$0xff] %v2530
        %2681 = vst [vmem:[%s238 + $0x20] sm:$0xff] %v2531
        %2682 = vst [vmem:[%s238 + $0x28] sm:$0xff] %v2532
        %2683 = vst [vmem:[%s238 + $0x30] sm:$0xff] %v2533
        %2684 = vst [vmem:[%s238 + $0x38] sm:$0xff] %v2534
        %2685 = vst [vmem:[%s238 + $0x40] sm:$0xff] %v2535
        %2686 = vst [vmem:[%s238 + $0x48] sm:$0xff] %v2536
        %2687 = vst [vmem:[%s238 + $0x50] sm:$0xff] %v2537
        %2688 = vst [vmem:[%s238 + $0x58] sm:$0xff] %v2538
        %2689 = vst [vmem:[%s238 + $0x60] sm:$0xff] %v2539
        %2690 = vst [vmem:[%s238 + $0x68] sm:$0xff] %v2540
        %2691 = vst [vmem:[%s238 + $0x70] sm:$0xff] %v2541
        %2692 = vst [vmem:[%s238 + $0x78] sm:$0xff] %v2542
        %2693 = vst [vmem:[%s238 + $0x80] sm:$0xff] %v2543
        %2694 = vst [vmem:[%s238 + $0x88] sm:$0xff] %v2544
        %2695 = vst [vmem:[%s238 + $0x90] sm:$0xff] %v2545
        %2696 = vst [vmem:[%s238 + $0x98] sm:$0xff] %v2546
        %2697 = vst [vmem:[%s238 + $0xa0] sm:$0xff] %v2547
        %2698 = vst [vmem:[%s238 + $0xa8] sm:$0xff] %v2548
        %2699 = vst [vmem:[%s238 + $0xb0] sm:$0xff] %v2549
        %2700 = vst [vmem:[%s238 + $0xb8] sm:$0xff] %v2550
        %2701 = vst [vmem:[%s238 + $0xc0] sm:$0xff] %v2551
        %2702 = vst [vmem:[%s238 + $0xc8] sm:$0xff] %v2552
        %2703 = vst [vmem:[%s238 + $0xd0] sm:$0xff] %v2553
        %2704 = vst [vmem:[%s238 + $0xd8] sm:$0xff] %v2554
        %2705 = vst [vmem:[%s238 + $0xe0] sm:$0xff] %v2555
        %2706 = vst [vmem:[%s238 + $0xe8] sm:$0xff] %v2556
        %2707 = vst [vmem:[%s238 + $0xf0] sm:$0xff] %v2557
        %2708 = vst [vmem:[%s238 + $0xf8] sm:$0xff] %v2558
        %2709 = vst [vmem:[%s238 + $0x100] sm:$0xff] %v2559
        %2710 = vst [vmem:[%s238 + $0x108] sm:$0xff] %v2560
        %2711 = vst [vmem:[%s238 + $0x110] sm:$0xff] %v2561
        %2712 = vst [vmem:[%s238 + $0x118] sm:$0xff] %v2562
        %2713 = vst [vmem:[%s238 + $0x120] sm:$0xff] %v2563
        %2714 = vst [vmem:[%s238 + $0x128] sm:$0xff] %v2564
        %2715 = vst [vmem:[%s238 + $0x130] sm:$0xff] %v2565
        %2716 = vst [vmem:[%s238 + $0x138] sm:$0xff] %v2566
        %2717 = vst [vmem:[%s238 + $0x140] sm:$0xff] %v2567
        %2718 = vst [vmem:[%s238 + $0x148] sm:$0xff] %v2568
        %2719 = vst [vmem:[%s238 + $0x150] sm:$0xff] %v2569
        %2720 = vst [vmem:[%s238 + $0x158] sm:$0xff] %v2570
        %2721 = vst [vmem:[%s238 + $0x160] sm:$0xff] %v2571
        %2722 = vst [vmem:[%s238 + $0x168] sm:$0xff] %v2572
        %2723 = vst [vmem:[%s238 + $0x170] sm:$0xff] %v2573
        %2724 = vst [vmem:[%s238 + $0x178] sm:$0xff] %v2574
        %2725 = vst [vmem:[%s238 + $0x180] sm:$0xff] %v2575
        %2726 = vst [vmem:[%s238 + $0x188] sm:$0xff] %v2576
        %2727 = vst [vmem:[%s238 + $0x190] sm:$0xff] %v2577
        %2728 = vst [vmem:[%s238 + $0x198] sm:$0xff] %v2578
        %2729 = vst [vmem:[%s238 + $0x1a0] sm:$0xff] %v2579
        %2730 = vst [vmem:[%s238 + $0x1a8] sm:$0xff] %v2580
        %2731 = vst [vmem:[%s238 + $0x1b0] sm:$0xff] %v2581
        %2732 = vst [vmem:[%s238 + $0x1b8] sm:$0xff] %v2582
        %2733 = vst [vmem:[%s238 + $0x1c0] sm:$0xff] %v2583
        %2734 = vst [vmem:[%s238 + $0x1c8] sm:$0xff] %v2584
        %2735 = vst [vmem:[%s238 + $0x1d0] sm:$0xff] %v2585
        %2736 = vst [vmem:[%s238 + $0x1d8] sm:$0xff] %v2586
        %2737 = vst [vmem:[%s238 + $0x1e0] sm:$0xff] %v2587
        %2738 = vst [vmem:[%s238 + $0x1e8] sm:$0xff] %v2588
        %2739 = vst [vmem:[%s238 + $0x1f0] sm:$0xff] %v2589
        %2740 = vst [vmem:[%s238 + $0x1f8] sm:$0xff] %v2590
        %2741 = vst [vmem:[%s238 + $0x200] sm:$0xff] %v2591
        %2742 = vst [vmem:[%s238 + $0x208] sm:$0xff] %v2592
        %2743 = vst [vmem:[%s238 + $0x210] sm:$0xff] %v2593
        %2744 = vst [vmem:[%s238 + $0x218] sm:$0xff] %v2594
        %2745 = vst [vmem:[%s238 + $0x220] sm:$0xff] %v2595
        %2746 = vst [vmem:[%s238 + $0x228] sm:$0xff] %v2596
        %2747 = vst [vmem:[%s238 + $0x230] sm:$0xff] %v2597
        %2748 = vst [vmem:[%s238 + $0x238] sm:$0xff] %v2598
        %2749 = vst [vmem:[%s238 + $0x240] sm:$0xff] %v2599
        %2750 = vst [vmem:[%s238 + $0x248] sm:$0xff] %v2600
        %2751 = vst [vmem:[%s238 + $0x250] sm:$0xff] %v2601
        %2752 = vst [vmem:[%s238 + $0x258] sm:$0xff] %v2602
        %2753 = vst [vmem:[%s238 + $0x260] sm:$0xff] %v2603
        %2754 = vst [vmem:[%s238 + $0x268] sm:$0xff] %v2604
        %2755 = vst [vmem:[%s238 + $0x270] sm:$0xff] %v2605
        %2756 = vst [vmem:[%s238 + $0x278] sm:$0xff] %v2606
        %2757 = vst [vmem:[%s238 + $0x280] sm:$0xff] %v2607
        %2758 = vst [vmem:[%s238 + $0x288] sm:$0xff] %v2608
        %2759 = vst [vmem:[%s238 + $0x290] sm:$0xff] %v2609
        %2760 = vst [vmem:[%s238 + $0x298] sm:$0xff] %v2610
        %2761 = vst [vmem:[%s238 + $0x2a0] sm:$0xff] %v2611
        %2762 = vst [vmem:[%s238 + $0x2a8] sm:$0xff] %v2612
        %2763 = vst [vmem:[%s238 + $0x2b0] sm:$0xff] %v2613
        %2764 = vst [vmem:[%s238 + $0x2b8] sm:$0xff] %v2614
        %2765 = vst [vmem:[%s238 + $0x2c0] sm:$0xff] %v2615
        %2766 = vst [vmem:[%s238 + $0x2c8] sm:$0xff] %v2616
        %2767 = vst [vmem:[%s238 + $0x2d0] sm:$0xff] %v2617
        %2768 = vst [vmem:[%s238 + $0x2d8] sm:$0xff] %v2618
        %2769 = vst [vmem:[%s238 + $0x2e0] sm:$0xff] %v2619
        %2770 = vst [vmem:[%s238 + $0x2e8] sm:$0xff] %v2620
        %2771 = vst [vmem:[%s238 + $0x2f0] sm:$0xff] %v2621
        %2772 = vst [vmem:[%s238 + $0x2f8] sm:$0xff] %v2622
        %2773 = vst [vmem:[%s238 + $0x300] sm:$0xff] %v2623
        %2774 = vst [vmem:[%s238 + $0x308] sm:$0xff] %v2624
        %2775 = vst [vmem:[%s238 + $0x310] sm:$0xff] %v2625
        %2776 = vst [vmem:[%s238 + $0x318] sm:$0xff] %v2626
        %2777 = vst [vmem:[%s238 + $0x320] sm:$0xff] %v2627
        %2778 = vst [vmem:[%s238 + $0x328] sm:$0xff] %v2628
        %2779 = vst [vmem:[%s238 + $0x330] sm:$0xff] %v2629
        %2780 = vst [vmem:[%s238 + $0x338] sm:$0xff] %v2630
        %2781 = vst [vmem:[%s238 + $0x340] sm:$0xff] %v2631
        %2782 = vst [vmem:[%s238 + $0x348] sm:$0xff] %v2632
        %2783 = vst [vmem:[%s238 + $0x350] sm:$0xff] %v2633
        %2784 = vst [vmem:[%s238 + $0x358] sm:$0xff] %v2634
        %2785 = vst [vmem:[%s238 + $0x360] sm:$0xff] %v2635
        %2786 = vst [vmem:[%s238 + $0x368] sm:$0xff] %v2636
        %2787 = vst [vmem:[%s238 + $0x370] sm:$0xff] %v2637
        %2788 = vst [vmem:[%s238 + $0x378] sm:$0xff] %v2638
        %2789 = vst [vmem:[%s238 + $0x380] sm:$0xff] %v2639
        %2790 = vst [vmem:[%s238 + $0x388] sm:$0xff] %v2640
        %2791 = vst [vmem:[%s238 + $0x390] sm:$0xff] %v2641
        %2792 = vst [vmem:[%s238 + $0x398] sm:$0xff] %v2642
        %2793 = vst [vmem:[%s238 + $0x3a0] sm:$0xff] %v2643
        %2794 = vst [vmem:[%s238 + $0x3a8] sm:$0xff] %v2644
        %2795 = vst [vmem:[%s238 + $0x3b0] sm:$0xff] %v2645
        %2796 = vst [vmem:[%s238 + $0x3b8] sm:$0xff] %v2646
        %2797 = vst [vmem:[%s238 + $0x3c0] sm:$0xff] %v2647
        %2798 = vst [vmem:[%s238 + $0x3c8] sm:$0xff] %v2648
        %2799 = vst [vmem:[%s238 + $0x3d0] sm:$0xff] %v2649
        %2800 = vst [vmem:[%s238 + $0x3d8] sm:$0xff] %v2650
        %2801 = vst [vmem:[%s238 + $0x3e0] sm:$0xff] %v2651
        %2802 = vst [vmem:[%s238 + $0x3e8] sm:$0xff] %v2652
        %2803 = vst [vmem:[%s238 + $0x3f0] sm:$0xff] %v2653
        %2804 = vst [vmem:[%s238 + $0x3f8] sm:$0xff] %v2654
        %2805 = vst [vmem:[%s238 + $0x400] sm:$0xff] %v2655
        %2806 = vst [vmem:[%s238 + $0x408] sm:$0xff] %v2656
        %2807 = vst [vmem:[%s238 + $0x410] sm:$0xff] %v2657
        %2808 = vst [vmem:[%s238 + $0x418] sm:$0xff] %v2658
        %2809 = vst [vmem:[%s238 + $0x420] sm:$0xff] %v2659
        %2810 = vst [vmem:[%s238 + $0x428] sm:$0xff] %v2660
        %2811 = vst [vmem:[%s238 + $0x430] sm:$0xff] %v2661
        %2812 = vst [vmem:[%s238 + $0x438] sm:$0xff] %v2662
        %2813 = vst [vmem:[%s238 + $0x440] sm:$0xff] %v2663
        %2814 = vst [vmem:[%s238 + $0x448] sm:$0xff] %v2664
        %2815 = vst [vmem:[%s238 + $0x450] sm:$0xff] %v2665
        %2816 = vst [vmem:[%s238 + $0x458] sm:$0xff] %v2666
        %2817 = vst [vmem:[%s238 + $0x460] sm:$0xff] %v2667
        %2818 = vst [vmem:[%s238 + $0x468] sm:$0xff] %v2668
        %2819 = vst [vmem:[%s238 + $0x470] sm:$0xff] %v2669
        %2820 = vst [vmem:[%s238 + $0x478] sm:$0xff] %v2670
        %2821 = vst [vmem:[%s238 + $0x480] sm:$0xf] %v2671
        %2822 = vst [vmem:[%s238 + $0x488] sm:$0xf] %v2672
        %2823 = vst [vmem:[%s238 + $0x490] sm:$0xf] %v2673
        %2824 = vst [vmem:[%s238 + $0x498] sm:$0xf] %v2674
        %2825 = vst [vmem:[%s238 + $0x4a0] sm:$0xf] %v2675
        %2826 = vst [vmem:[%s238 + $0x4a8] sm:$0xf] %v2676
        %s2827 = sand.u32 %s102, 1
        %s2828 = scalar_lea.sflag [#allocation4], %s2827
        %s2829 = sand.u32 %s102, 1
        %s2830 = smul.addr %s2829, 1200
        %s2831 = scalar_lea.vmem [#allocation8], %s2830
        // Predicated region
        $region45: #{tpu_custom_call.1} parent=31 // pred_check
          %p2832 = pneg %p112
        $region46: #{tpu_custom_call.1} parent=31 // pred_check_branch
          %2834 = sbr.rel (%p2832) target = $region48
        $region47: #{tpu_custom_call.1} parent=31 // pred_region
          %s2835 = smul.u32 6, %s21
          %s2837 = ssub.s32 19200, 19200
          %2838 = vsyncadd %s2828, %s2837
          %s2839 = smul.addr %s2835, 128
          %s2840 = scalar_lea.hbm %s3, %s2839
          %s2841 = sshll.u32 %s2831, 4
          %s2842 = int_to_ptr.vmem [resolvable:$true] %s2841
          %2847 = dma.vmem_to_hbm [thread:$0]  %s2842, 19200, %s2840, %s2828, 768, 1536, 48
        $region48: #{tpu_custom_call.1} parent=31 // pred_fallthru
          _
      $region32: #{tpu_custom_call.1} parent=5 // pred_fallthru
        _
      %p2848 = scmp.le.s32.totalorder 2, %s16
      // Predicated region
      $region49: #{tpu_custom_call.1} parent=5 // pred_check
        %p2849 = pneg %p2848
      $region50: #{tpu_custom_call.1} parent=5 // pred_check_branch
        %2851 = sbr.rel (%p2849) target = $region52
      $region51: #{tpu_custom_call.1} parent=5 // pred_region
        %s2852 = ssub.s32 %s16, 2
        // Predicated region
        $region53: #{tpu_custom_call.1} parent=51 // pred_check
          %p2853 = pneg %p118
        $region54: #{tpu_custom_call.1} parent=51 // pred_check_branch
          %2855 = sbr.rel (%p2853) target = $region56
        $region55: #{tpu_custom_call.1} parent=51 // pred_region
          %s2856 = sand.u32 %s103, 1
          %s2857 = scalar_lea.sflag [#allocation4], %s2856
          %s2858 = sand.u32 %s103, 1
          %s2859 = smul.addr %s2858, 1200
          %s2860 = scalar_lea.vmem [#allocation8], %s2859
          %2861 = dma.done %s2857, 19200
        $region56: #{tpu_custom_call.1} parent=51 // pred_fallthru
          _
      $region52: #{tpu_custom_call.1} parent=5 // pred_fallthru
        _
    $region6: #{tpu_custom_call.1} parent=1 // loop_footer
      %s20 = sadd.s32 1, %s16
    $region7: #{tpu_custom_call.1} parent=1 // loop_footer_branch
      %15 = sbr.rel target = $region3
    $region8: #{tpu_custom_call.1} parent=1 // loop_exit
      _
    %2862 = vsyncpa [#allocation3], 1
    %s2863 = scalar_lea.sflag [#allocation3], 1
    %2864 = vsyncpa %s2863, 1
    %2865 = vsyncpa [#allocation6], 1
    %s2866 = scalar_lea.sflag [#allocation6], 1
    %2867 = vsyncpa %s2866, 1
    %2868 = vsyncpa [#allocation4], 1
    %s2869 = scalar_lea.sflag [#allocation4], 1
    %2870 = vsyncpa %s2869, 1

</llo_original>
